<compile_context>
chip_gen: v7x
topology: tpu7x:2x2x1
jax: 0.10.0
libtpu: 0.0.40
codegen_flags: <defaults>
</compile_context>

<pallas_src>
import jax
import jax.numpy as jnp
from jax.experimental import pallas as pl
from jax.experimental.pallas import tpu as pltpu

BN_EPS = 1e-5
N_CLASSES = 10


def _binarize_f32(v):
    # BNN sign with sign(0) -> +1, in float32.
    return jnp.where(v >= 0, 1.0, -1.0).astype(jnp.float32)


# ---------------------------------------------------------------------------
# Kernel 1: layer 1 = QuantizedLinear(784,2048) + folded BN + Hardtanh + sign
# ---------------------------------------------------------------------------
def fc1_kernel(x_ref, w_ref, inv_ref, shift_ref, o_ref):
    # Weights arrive pre-binarized (+-1) in bf16 (half the HBM bytes of f32); upcast
    # to f32 so layer-1 math on the raw-pixel LHS stays identical to the f32 module.
    w = w_ref[...].astype(jnp.float32)
    y = jnp.dot(x_ref[...], w, preferred_element_type=jnp.float32)
    y = y * inv_ref[...] + shift_ref[...]           # linear bias + BatchNorm1d (eval), folded
    # Hardtanh dropped: sign(clip(y, -1, 1)) == sign(y), including at 0.
    o_ref[...] = jnp.where(y >= 0, 1.0, -1.0).astype(jnp.bfloat16)


# ---------------------------------------------------------------------------
# Kernel 2: fused layers 2+3 = QL(2048,2048)+BN+Hardtanh+sign -> QL(2048,10pad) -> Scale
# Grid iterates over tiles of layer-2 output features; layer-3 partial products are
# accumulated in a VMEM scratch so the +-1 activations never touch HBM.
# ---------------------------------------------------------------------------
def fc23_kernel(h_ref, w2_ref, inv2_ref, shift2_ref, w3_ref, b3_ref, scale_ref,
                o_ref, acc_ref):
    j = pl.program_id(0)

    @pl.when(j == 0)
    def _():
        acc_ref[...] = jnp.zeros_like(acc_ref)

    # Layer 2: +-1 x +-1 bf16 matmul, exact with f32 accumulation.
    y2 = jnp.dot(h_ref[...], w2_ref[...], preferred_element_type=jnp.float32)
    y2 = y2 * inv2_ref[...] + shift2_ref[...]
    a2 = jnp.where(y2 >= 0, 1.0, -1.0).astype(jnp.bfloat16)

    # Layer 3: partial contribution of this 2048-feature tile.
    acc_ref[...] += jnp.dot(a2, w3_ref[...], preferred_element_type=jnp.float32)

    @pl.when(j == pl.num_programs(0) - 1)
    def _():
        o_ref[...] = (acc_ref[...] + b3_ref[...]) * scale_ref[0, 0]


# ---------------------------------------------------------------------------
# pallas_call wrappers
# ---------------------------------------------------------------------------
def quant_fc1(x, w1q, inv1, shift1, *, tile_n=1024):
    B, K = x.shape
    N = w1q.shape[1]
    assert N % tile_n == 0
    col = lambda j: (0, j)
    return pl.pallas_call(
        fc1_kernel,
        out_shape=jax.ShapeDtypeStruct((B, N), jnp.bfloat16),
        grid_spec=pltpu.PrefetchScalarGridSpec(
            num_scalar_prefetch=0,
            grid=(N // tile_n,),
            in_specs=[
                pl.BlockSpec((B, K), lambda j: (0, 0)),        # activations (resident)
                pl.BlockSpec((K, tile_n), col),                # +-1 bf16 weight tile
                pl.BlockSpec((1, tile_n), col),                # folded BN scale
                pl.BlockSpec((1, tile_n), col),                # folded BN shift (incl. bias)
            ],
            out_specs=pl.BlockSpec((B, tile_n), col),
        ),
        compiler_params=pltpu.CompilerParams(
            dimension_semantics=("parallel",)),
    )(x, w1q, inv1, shift1)


def quant_fc23(h, w2q, inv2, shift2, w3q, b3p, scale, *, tile_n=1024):
    B, K = h.shape
    N2 = w2q.shape[1]
    N3 = w3q.shape[1]                     # 10 padded to 128 (lane-dense output)
    assert N2 % tile_n == 0 and w3q.shape[0] == N2
    col = lambda j: (0, j)
    return pl.pallas_call(
        fc23_kernel,
        out_shape=jax.ShapeDtypeStruct((B, N3), jnp.float32),
        grid_spec=pltpu.PrefetchScalarGridSpec(
            num_scalar_prefetch=0,
            grid=(N2 // tile_n,),
            in_specs=[
                pl.BlockSpec((B, K), lambda j: (0, 0)),        # +-1 bf16 activations (resident)
                pl.BlockSpec((K, tile_n), col),                # layer-2 weight tile
                pl.BlockSpec((1, tile_n), col),                # layer-2 folded BN scale
                pl.BlockSpec((1, tile_n), col),                # layer-2 folded BN shift
                pl.BlockSpec((tile_n, N3), lambda j: (j, 0)),  # layer-3 weight row tile
                pl.BlockSpec((1, N3), lambda j: (0, 0)),       # layer-3 bias (padded)
                pl.BlockSpec(memory_space=pltpu.MemorySpace.SMEM),  # learnable scale scalar
            ],
            out_specs=pl.BlockSpec((B, N3), lambda j: (0, 0)),
            scratch_shapes=[pltpu.VMEM((B, N3), jnp.float32)],
        ),
        # The grid axis is a reduction for the layer-3 accumulator -> arbitrary.
        compiler_params=pltpu.CompilerParams(
            dimension_semantics=("arbitrary",)),
    )(h, w2q, inv2, shift2, w3q, b3p, scale)


# ---------------------------------------------------------------------------
# Parameter preparation (done once, outside the kernels)
# ---------------------------------------------------------------------------
def prepare_params(p):
    f32 = jnp.float32

    def fold_bn(b, g, be, m, v):
        inv = g * jax.lax.rsqrt(v + BN_EPS)          # gamma / sqrt(var + eps)
        shift = be + (b - m) * inv                   # beta + (bias - mean) * inv
        return inv.astype(f32), shift.astype(f32)

    inv1, shift1 = fold_bn(p["b1"], p["g1"], p["be1"], p["m1"], p["v1"])
    inv2, shift2 = fold_bn(p["b2"], p["g2"], p["be2"], p["m2"], p["v2"])

    w1q = _binarize_f32(p["w1"]).astype(jnp.bfloat16)
    w2q = _binarize_f32(p["w2"]).astype(jnp.bfloat16)
    w3q = _binarize_f32(p["w3"]).astype(jnp.bfloat16)

    pad = (-w3q.shape[1]) % 128                      # 10 -> 128 for lane-dense store
    w3q = jnp.pad(w3q, ((0, 0), (0, pad)))           # zero columns are sliced off later
    b3p = jnp.pad(p["b3"], ((0, 0), (0, pad))).astype(f32)

    return dict(w1q=w1q, inv1=inv1, shift1=shift1,
                w2q=w2q, inv2=inv2, shift2=shift2,
                w3q=w3q, b3p=b3p, scale=p["scale"].astype(f32))


# ---------------------------------------------------------------------------
# Full module forward + pure-JAX reference
# ---------------------------------------------------------------------------
def bnn_fashion_fc_forward(x, kp):
    B = x.shape[0]
    h = x.reshape(B, -1).astype(jnp.float32)         # torch.flatten(x, 1, 3)
    a1 = quant_fc1(h, kp["w1q"], kp["inv1"], kp["shift1"])
    out_pad = quant_fc23(a1, kp["w2q"], kp["inv2"], kp["shift2"],
                         kp["w3q"], kp["b3p"], kp["scale"])
    return out_pad[:, :N_CLASSES]


def bnn_fashion_fc_reference(x, kp):
    """Pure-JAX reference with identical (folded) eval semantics."""
    B = x.shape[0]
    h = x.reshape(B, -1).astype(jnp.float32)
    y1 = h @ kp["w1q"].astype(jnp.float32)
    a1 = _binarize_f32(y1 * kp["inv1"] + kp["shift1"])      # hardtanh+sign == sign
    y2 = a1 @ kp["w2q"].astype(jnp.float32)
    a2 = _binarize_f32(y2 * kp["inv2"] + kp["shift2"])
    y3 = a2 @ kp["w3q"].astype(jnp.float32)
    return ((y3 + kp["b3p"]) * kp["scale"][0, 0])[:, :N_CLASSES]


def init_params(key):
    ks = jax.random.split(key, 20)
    f32 = jnp.float32

    def linear(kw, kb, fan_in, fan_out):
        bound = 1.0 / jnp.sqrt(fan_in)
        w = jax.random.uniform(kw, (fan_in, fan_out), f32, -bound, bound)
        b = jax.random.uniform(kb, (1, fan_out), f32, -bound, bound)
        return w, b

    def bn(kg, kb, km, kv, n):
        g = 1.0 + 0.1 * jax.random.normal(kg, (1, n), f32)
        be = 0.1 * jax.random.normal(kb, (1, n), f32)
        m = 0.1 * jax.random.normal(km, (1, n), f32)
        v = jnp.abs(jax.random.normal(kv, (1, n), f32)) + 0.5
        return g, be, m, v

    w1, b1 = linear(ks[0], ks[1], 28 * 28, 2048)
    g1, be1, m1, v1 = bn(ks[2], ks[3], ks[4], ks[5], 2048)
    w2, b2 = linear(ks[6], ks[7], 2048, 2048)
    g2, be2, m2, v2 = bn(ks[8], ks[9], ks[10], ks[11], 2048)
    w3, b3 = linear(ks[12], ks[13], 2048, 10)
    scale = jnp.full((1, 1), 0.001, f32)              # Scale(init_value=0.001)

    return dict(w1=w1, b1=b1, g1=g1, be1=be1, m1=m1, v1=v1,
                w2=w2, b2=b2, g2=g2, be2=be2, m2=m2, v2=v2,
                w3=w3, b3=b3, scale=scale)


if __name__ == "__main__":
    key = jax.random.PRNGKey(0)
    k_p, k_x = jax.random.split(key)
    kernel_params = prepare_params(init_params(k_p))

    # Fashion-MNIST-shaped NCHW input with 8-bit pixel levels in [0, 1).  Using exact
    # multiples of 1/256 keeps every matmul in the net integer-exact, so the Pallas
    # output matches the pure-JAX reference essentially bit-for-bit.
    x = jax.random.randint(k_x, (8, 1, 28, 28), 0, 256).astype(jnp.float32) / 256.0

    out = jax.block_until_ready(bnn_fashion_fc_forward(x, kernel_params))
    ref = jax.block_until_ready(bnn_fashion_fc_reference(x, kernel_params))

    assert out.shape == (8, N_CLASSES), out.shape
    assert jnp.allclose(out, ref, atol=1e-5, rtol=1e-5), "mismatch vs reference"
    print("KERNEL_OK")
</pallas_src>

<mosaic_0001>
module attributes {stable_mosaic.version = 11 : i64} {
  func.func @fc1_kernel(%arg0: i32, %arg1: memref<8x784xf32, #tpu.memory_space<vmem>>, %arg2: memref<784x1024xbf16, #tpu.memory_space<vmem>>, %arg3: memref<1x1024xf32, #tpu.memory_space<vmem>>, %arg4: memref<1x1024xf32, #tpu.memory_space<vmem>>, %arg5: memref<8x1024xbf16, #tpu.memory_space<vmem>>) attributes {dimension_semantics = [#tpu.dimension_semantics<parallel>], iteration_bounds = array<i64: 2>, scalar_prefetch = 0 : i64, scratch_operands = 0 : i64, tpu.core_type = #tpu.core_type<tc>, window_params = [{pipeline_mode = #tpu.pipeline_mode<synchronous>, transform_indices = @transform_0, window_bounds = array<i64: 8, 784>}, {transform_indices = @transform_1, window_bounds = array<i64: 784, 1024>}, {transform_indices = @transform_2, window_bounds = array<i64: 1, 1024>}, {transform_indices = @transform_3, window_bounds = array<i64: 1, 1024>}, {transform_indices = @transform_4, window_bounds = array<i64: 8, 1024>}]} {
    %c0 = arith.constant 0 : index
    %c0_0 = arith.constant 0 : index
    %0 = vector.load %arg2[%c0, %c0_0] : memref<784x1024xbf16, #tpu.memory_space<vmem>>, vector<784x1024xbf16>
    %1 = arith.extf %0 : vector<784x1024xbf16> to vector<784x1024xf32>
    %c0_1 = arith.constant 0 : index
    %c0_2 = arith.constant 0 : index
    %2 = vector.load %arg1[%c0_1, %c0_2] : memref<8x784xf32, #tpu.memory_space<vmem>>, vector<8x784xf32>
    %cst = arith.constant dense<0.000000e+00> : vector<8x1024xf32>
    %3 = tpu.matmul %2, %1, %cst {dimension_numbers = #tpu.dot_dimension_numbers<[1], [0], [0], [1], [0, 0, 1, 1], [], []>} : vector<8x784xf32>, vector<784x1024xf32>, vector<8x1024xf32> -> vector<8x1024xf32>
    %c0_3 = arith.constant 0 : index
    %c0_4 = arith.constant 0 : index
    %4 = vector.load %arg3[%c0_3, %c0_4] : memref<1x1024xf32, #tpu.memory_space<vmem>>, vector<1x1024xf32>
    %5 = vector.broadcast %4 : vector<1x1024xf32> to vector<8x1024xf32>
    %6 = arith.mulf %3, %5 : vector<8x1024xf32>
    %c0_5 = arith.constant 0 : index
    %c0_6 = arith.constant 0 : index
    %7 = vector.load %arg4[%c0_5, %c0_6] : memref<1x1024xf32, #tpu.memory_space<vmem>>, vector<1x1024xf32>
    %8 = vector.broadcast %7 : vector<1x1024xf32> to vector<8x1024xf32>
    %9 = arith.addf %6, %8 : vector<8x1024xf32>
    %cst_7 = arith.constant 0.000000e+00 : f32
    %10 = vector.broadcast %cst_7 : f32 to vector<8x1024xf32>
    %11 = arith.cmpf oge, %9, %10 : vector<8x1024xf32>
    %cst_8 = arith.constant 1.000000e+00 : f32
    %cst_9 = arith.constant -1.000000e+00 : f32
    %12 = vector.broadcast %cst_8 : f32 to vector<8x1024xf32>
    %13 = vector.broadcast %cst_9 : f32 to vector<8x1024xf32>
    %14 = arith.select %11, %12, %13 : vector<8x1024xi1>, vector<8x1024xf32>
    %15 = arith.truncf %14 : vector<8x1024xf32> to vector<8x1024xbf16>
    %c0_10 = arith.constant 0 : index
    %c0_11 = arith.constant 0 : index
    %16 = vector.load %arg5[%c0_10, %c0_11] : memref<8x1024xbf16, #tpu.memory_space<vmem>>, vector<8x1024xbf16>
    tpu.vector_store %arg5[%c0_10, %c0_11], %15 {strides = array<i32>} : memref<8x1024xbf16, #tpu.memory_space<vmem>>, vector<8x1024xbf16>,
    return
  }
  func.func @transform_0(%arg0: i32) -> (i32, i32) {
    %c0_i32 = arith.constant 0 : i32
    %c0_i32_0 = arith.constant 0 : i32
    %c0_i32_1 = arith.constant 0 : i32
    return %c0_i32, %c0_i32_0 : i32, i32
  }
  func.func @transform_1(%arg0: i32) -> (i32, i32) {
    %c0_i32 = arith.constant 0 : i32
    %c0_i32_0 = arith.constant 0 : i32
    return %c0_i32, %arg0 : i32, i32
  }
  func.func @transform_2(%arg0: i32) -> (i32, i32) {
    %c0_i32 = arith.constant 0 : i32
    %c0_i32_0 = arith.constant 0 : i32
    return %c0_i32, %arg0 : i32, i32
  }
  func.func @transform_3(%arg0: i32) -> (i32, i32) {
    %c0_i32 = arith.constant 0 : i32
    %c0_i32_0 = arith.constant 0 : i32
    return %c0_i32, %arg0 : i32, i32
  }
  func.func @transform_4(%arg0: i32) -> (i32, i32) {
    %c0_i32 = arith.constant 0 : i32
    %c0_i32_0 = arith.constant 0 : i32
    return %c0_i32, %arg0 : i32, i32
  }
}

</mosaic_0001>

<llo_original>
// kernel: tpu_custom_call.1
$region0: #{tpu_custom_call.1}
  #allocation0 [shape = 'u32[]', space=smem, size = 0x4, offset = 0x4, fixed_abs, tag = 'smem constant byte address 0x4 - core index']
  #allocation1 [shape = 'u32[144,128]{1,0:T(1,128)}', space=vmem, size = 0x12000, scoped, tag = 'internal scratch']
  %s0 = inlined_call_operand.hbm [shape: f32[8,784], index: 0, kind: input, shape index: {}]
  %s1 = inlined_call_operand.hbm [shape: bf16[784,2048], index: 1, kind: input, shape index: {}]
  %s2 = inlined_call_operand.hbm [shape: f32[1,2048], index: 2, kind: input, shape index: {}]
  %s3 = inlined_call_operand.hbm [shape: f32[1,2048], index: 3, kind: input, shape index: {}]
  %s4 = inlined_call_operand.hbm [shape: bf16[8,2048], index: 4, kind: output, shape index: {}]
  %s5 = sld [smem:[#allocation0]]
  $region65: #{tpu_custom_call.1} parent=0
    _
  %s7 = ssub.s32 1, %s5
  %s8 = scalar_select 0, %s7, %s5
  $region1: #{tpu_custom_call.1} parent=0
    #allocation2 [shape = 'u8[28672]{0}', space=vmem, size = 0x7000, scoped, tag = 'input window, operand 0, single buffered']
    #allocation3 [shape = 's32[2]{0}', space=sflag, size = 0x8, scoped, tag = 'scoped memory for tpu_custom_call.1']
    #allocation4 [shape = 's32[2]{0}', space=sflag, size = 0x8, scoped, tag = 'scoped memory for tpu_custom_call.1']
    #allocation5 [shape = 'u8[3211264]{0}', space=vmem, size = 0x310000, scoped, tag = 'input window, operand 1']
    #allocation6 [shape = 's32[2]{0}', space=sflag, size = 0x8, scoped, tag = 'scoped memory for tpu_custom_call.1']
    #allocation7 [shape = 'u8[8192]{0}', space=vmem, size = 0x2000, scoped, tag = 'input window, operand 2']
    #allocation8 [shape = 'u8[8192]{0}', space=vmem, size = 0x2000, scoped, tag = 'input window, operand 3']
    #allocation9 [shape = 's32[2]{0}', space=sflag, size = 0x8, scoped, tag = 'scoped memory for tpu_custom_call.1']
    #allocation10 [shape = 'u8[32768]{0}', space=vmem, size = 0x8000, scoped, tag = 'output window, operand 0']
    %9 = vsyncpa [#allocation3], 0
    %10 = vsyncpa [#allocation6], 0
    %s11 = scalar_lea.sflag [#allocation6], 1
    %12 = vsyncpa %s11, 0
    %13 = vsyncpa [#allocation9], 0
    %s14 = scalar_lea.sflag [#allocation9], 1
    %15 = vsyncpa %s14, 0
    %16 = vsyncpa [#allocation4], 0
    %s17 = scalar_lea.sflag [#allocation4], 1
    %18 = vsyncpa %s17, 0
    loop: start=0, step=1, limit=4
    $region2: #{tpu_custom_call.1} parent=1 // loop_pre_header
      _
    $region3: #{tpu_custom_call.1} parent=1 // loop_header
      %s20 = sphi 0, %s24
      %p21 = scmp.ge.s32.totalorder %s20, 4
      %s28 = sphi 0, %s28
      %s30 = sphi 0, %s28
      %s31 = sphi 0, %s30
      %s45 = sphi 0, %s31
      %s51 = sphi 0, %s53
      %s54 = sphi 0, %s51
      %s55 = sphi 0, %s54
      %s71 = sphi 0, %s55
      %s77 = sphi 0, %s79
      %s80 = sphi 0, %s77
      %s81 = sphi 0, %s80
      %s97 = sphi 0, %s81
      %s103 = sphi 0, %s105
      %s106 = sphi 0, %s103
      %s107 = sphi 0, %s106
      %s123 = sphi 0, %s107
      %s129 = sphi 0, %s131
      %s132 = sphi 0, %s129
      %s133 = sphi 0, %s132
      %s149 = sphi 0, %s133
    $region4: #{tpu_custom_call.1} parent=1 // loop_header_branch
      %23 = sbr.rel (%p21) target = $region8
    $region5: #{tpu_custom_call.1} parent=1 // loop_body
      %s25 = ssub.s32 %s20, 1
      %s26 = ssub.s32 %s20, 2
      %s27 = sadd.s32 %s20, 1
      %s29 = sadd.s32 %s28, 1
      %p32 = scmp.eq.s32.totalorder %s20, 1
      %p33 = scmp.ne.s32.totalorder %s28, %s30
      %p34 = scmp.eq.s32.totalorder %s20, 0
      %p35 = por %p33, %p34
      %p36 = scmp.ne.s32.totalorder %s28, %s30
      %p37 = scmp.eq.s32.totalorder %s25, 1
      %p38 = por %p36, %p37
      %p39 = scmp.ne.s32.totalorder %s30, %s31
      %p40 = scmp.eq.s32.totalorder %s25, 0
      %p41 = por %p39, %p40
      %p42 = scmp.ne.s32.totalorder %s30, %s31
      %p43 = scmp.eq.s32.totalorder %s26, 1
      %p44 = por %p42, %p43
      %p46 = scmp.ne.s32.totalorder %s31, %s45
      %p47 = scmp.eq.s32.totalorder %s26, 0
      %p48 = por %p46, %p47
      %s49 = ssub.s32 %s20, %s27
      %p50 = scmp.eq.s32.totalorder %s49, 0
      %s52 = sadd.s32 %s51, 1
      %s53 = scalar_select %p50, %s51, %s52
      %p56 = pneg %p50
      %p57 = scmp.eq.s32.totalorder %s20, 1
      %p58 = por %p56, %p57
      %p59 = scmp.ne.s32.totalorder %s51, %s54
      %p60 = scmp.eq.s32.totalorder %s20, 0
      %p61 = por %p59, %p60
      %p62 = scmp.ne.s32.totalorder %s51, %s54
      %p63 = scmp.eq.s32.totalorder %s25, 1
      %p64 = por %p62, %p63
      %p65 = scmp.ne.s32.totalorder %s54, %s55
      %p66 = scmp.eq.s32.totalorder %s25, 0
      %p67 = por %p65, %p66
      %p68 = scmp.ne.s32.totalorder %s54, %s55
      %p69 = scmp.eq.s32.totalorder %s26, 1
      %p70 = por %p68, %p69
      %p72 = scmp.ne.s32.totalorder %s55, %s71
      %p73 = scmp.eq.s32.totalorder %s26, 0
      %p74 = por %p72, %p73
      %s75 = ssub.s32 %s20, %s27
      %p76 = scmp.eq.s32.totalorder %s75, 0
      %s78 = sadd.s32 %s77, 1
      %s79 = scalar_select %p76, %s77, %s78
      %p82 = pneg %p76
      %p83 = scmp.eq.s32.totalorder %s20, 1
      %p84 = por %p82, %p83
      %p85 = scmp.ne.s32.totalorder %s77, %s80
      %p86 = scmp.eq.s32.totalorder %s20, 0
      %p87 = por %p85, %p86
      %p88 = scmp.ne.s32.totalorder %s77, %s80
      %p89 = scmp.eq.s32.totalorder %s25, 1
      %p90 = por %p88, %p89
      %p91 = scmp.ne.s32.totalorder %s80, %s81
      %p92 = scmp.eq.s32.totalorder %s25, 0
      %p93 = por %p91, %p92
      %p94 = scmp.ne.s32.totalorder %s80, %s81
      %p95 = scmp.eq.s32.totalorder %s26, 1
      %p96 = por %p94, %p95
      %p98 = scmp.ne.s32.totalorder %s81, %s97
      %p99 = scmp.eq.s32.totalorder %s26, 0
      %p100 = por %p98, %p99
      %s101 = ssub.s32 %s20, %s27
      %p102 = scmp.eq.s32.totalorder %s101, 0
      %s104 = sadd.s32 %s103, 1
      %s105 = scalar_select %p102, %s103, %s104
      %p108 = pneg %p102
      %p109 = scmp.eq.s32.totalorder %s20, 1
      %p110 = por %p108, %p109
      %p111 = scmp.ne.s32.totalorder %s103, %s106
      %p112 = scmp.eq.s32.totalorder %s20, 0
      %p113 = por %p111, %p112
      %p114 = scmp.ne.s32.totalorder %s103, %s106
      %p115 = scmp.eq.s32.totalorder %s25, 1
      %p116 = por %p114, %p115
      %p117 = scmp.ne.s32.totalorder %s106, %s107
      %p118 = scmp.eq.s32.totalorder %s25, 0
      %p119 = por %p117, %p118
      %p120 = scmp.ne.s32.totalorder %s106, %s107
      %p121 = scmp.eq.s32.totalorder %s26, 1
      %p122 = por %p120, %p121
      %p124 = scmp.ne.s32.totalorder %s107, %s123
      %p125 = scmp.eq.s32.totalorder %s26, 0
      %p126 = por %p124, %p125
      %s127 = ssub.s32 %s20, %s27
      %p128 = scmp.eq.s32.totalorder %s127, 0
      %s130 = sadd.s32 %s129, 1
      %s131 = scalar_select %p128, %s129, %s130
      %p134 = pneg %p128
      %p135 = scmp.eq.s32.totalorder %s20, 1
      %p136 = por %p134, %p135
      %p137 = scmp.ne.s32.totalorder %s129, %s132
      %p138 = scmp.eq.s32.totalorder %s20, 0
      %p139 = por %p137, %p138
      %p140 = scmp.ne.s32.totalorder %s129, %s132
      %p141 = scmp.eq.s32.totalorder %s25, 1
      %p142 = por %p140, %p141
      %p143 = scmp.ne.s32.totalorder %s132, %s133
      %p144 = scmp.eq.s32.totalorder %s25, 0
      %p145 = por %p143, %p144
      %p146 = scmp.ne.s32.totalorder %s132, %s133
      %p147 = scmp.eq.s32.totalorder %s26, 1
      %p148 = por %p146, %p147
      %p150 = scmp.ne.s32.totalorder %s133, %s149
      %p151 = scmp.eq.s32.totalorder %s26, 0
      %p152 = por %p150, %p151
      %p153 = scmp.le.s32.totalorder 1, %s20
      %p154 = scmp.lt.s32.totalorder %s20, 3
      %p155 = pnand %p153, %p154
      %p156 = pneg %p155
      // Predicated region
      $region9: #{tpu_custom_call.1} parent=5 // pred_check
        _
      $region10: #{tpu_custom_call.1} parent=5 // pred_check_branch
        %158 = sbr.rel (%p155) target = $region12
      $region11: #{tpu_custom_call.1} parent=5 // pred_region
        %s159 = ssub.s32 %s20, 1
        // Predicated region
        $region13: #{tpu_custom_call.1} parent=11 // pred_check
          %p160 = pneg %p41
        $region14: #{tpu_custom_call.1} parent=11 // pred_check_branch
          %162 = sbr.rel (%p160) target = $region16
        $region15: #{tpu_custom_call.1} parent=11 // pred_region
          %s164 = ssub.s32 896, 896
          %165 = vsyncadd [#allocation3], %s164
          %s167 = sshll.u32 [#allocation2], 4
          %s168 = int_to_ptr.vmem [resolvable:$true] %s167
          %170 = dma.hbm_to_vmem [thread:$0]  %s0, 896, %s168, [#allocation3]
        $region16: #{tpu_custom_call.1} parent=11 // pred_fallthru
          _
      $region12: #{tpu_custom_call.1} parent=5 // pred_fallthru
        _
      %p171 = scmp.lt.s32.totalorder %s20, 2
      // Predicated region
      $region17: #{tpu_custom_call.1} parent=5 // pred_check
        %p172 = pneg %p171
      $region18: #{tpu_custom_call.1} parent=5 // pred_check_branch
        %174 = sbr.rel (%p172) target = $region20
      $region19: #{tpu_custom_call.1} parent=5 // pred_region
        // Predicated region
        $region21: #{tpu_custom_call.1} parent=19 // pred_check
          %p175 = pneg %p61
        $region22: #{tpu_custom_call.1} parent=19 // pred_check_branch
          %177 = sbr.rel (%p175) target = $region24
        $region23: #{tpu_custom_call.1} parent=19 // pred_region
          %s178 = sand.u32 %s20, 1
          %s179 = scalar_lea.sflag [#allocation6], %s178
          %s180 = sand.u32 %s51, 1
          %s181 = smul.addr %s180, 3136
          %s182 = scalar_lea.vmem [#allocation5], %s181
          %s183 = smul.u32 8, %s20
          %s185 = ssub.s32 50176, 50176
          %186 = vsyncadd %s179, %s185
          %s187 = smul.addr %s183, 64
          %s188 = scalar_lea.hbm %s1, %s187
          %s189 = sshll.u32 %s182, 4
          %s190 = int_to_ptr.vmem [resolvable:$true] %s189
          %195 = dma.hbm_to_vmem [thread:$0]  %s188, 50176, %s190, %s179, 1024, 512, 32
        $region24: #{tpu_custom_call.1} parent=19 // pred_fallthru
          _
        // Predicated region
        $region25: #{tpu_custom_call.1} parent=19 // pred_check
          %p196 = pneg %p87
        $region26: #{tpu_custom_call.1} parent=19 // pred_check_branch
          %198 = sbr.rel (%p196) target = $region28
        $region27: #{tpu_custom_call.1} parent=19 // pred_region
          %s199 = sand.u32 %s20, 1
          %s200 = scalar_lea.sflag [#allocation6], %s199
          %s201 = sand.u32 %s77, 1
          %s202 = smul.addr %s201, 8
          %s203 = scalar_lea.vmem [#allocation7], %s202
          %s204 = smul.u32 8, %s20
          %s206 = ssub.s32 128, 128
          %207 = vsyncadd %s200, %s206
          %s208 = smul.addr %s204, 16
          %s209 = scalar_lea.hbm %s2, %s208
          %s211 = sshll.u32 %s203, 4
          %s212 = int_to_ptr.vmem [resolvable:$true] %s211
          %214 = dma.hbm_to_vmem [thread:$0]  %s209, 128, %s212, %s200
        $region28: #{tpu_custom_call.1} parent=19 // pred_fallthru
          _
        // Predicated region
        $region29: #{tpu_custom_call.1} parent=19 // pred_check
          %p215 = pneg %p113
        $region30: #{tpu_custom_call.1} parent=19 // pred_check_branch
          %217 = sbr.rel (%p215) target = $region32
        $region31: #{tpu_custom_call.1} parent=19 // pred_region
          %s218 = sand.u32 %s103, 1
          %s219 = scalar_lea.sflag [#allocation9], %s218
          %s220 = sand.u32 %s103, 1
          %s221 = smul.addr %s220, 8
          %s222 = scalar_lea.vmem [#allocation8], %s221
          %s223 = smul.u32 8, %s20
          %s225 = ssub.s32 128, 128
          %226 = vsyncadd %s219, %s225
          %s227 = smul.addr %s223, 16
          %s228 = scalar_lea.hbm %s3, %s227
          %s230 = sshll.u32 %s222, 4
          %s231 = int_to_ptr.vmem [resolvable:$true] %s230
          %233 = dma.hbm_to_vmem [thread:$0]  %s228, 128, %s231, %s219
        $region32: #{tpu_custom_call.1} parent=19 // pred_fallthru
          _
      $region20: #{tpu_custom_call.1} parent=5 // pred_fallthru
        _
      %p234 = scmp.le.s32.totalorder 1, %s20
      %p235 = scmp.lt.s32.totalorder %s20, 3
      %p236 = pnand %p234, %p235
      %p237 = pneg %p236
      // Predicated region
      $region33: #{tpu_custom_call.1} parent=5 // pred_check
        _
      $region34: #{tpu_custom_call.1} parent=5 // pred_check_branch
        %239 = sbr.rel (%p236) target = $region36
      $region35: #{tpu_custom_call.1} parent=5 // pred_region
        %s240 = ssub.s32 %s20, 1
        // Predicated region
        $region37: #{tpu_custom_call.1} parent=35 // pred_check
          %p241 = pneg %p41
        $region38: #{tpu_custom_call.1} parent=35 // pred_check_branch
          %243 = sbr.rel (%p241) target = $region40
        $region39: #{tpu_custom_call.1} parent=35 // pred_region
          %244 = dma.done [#allocation3], 896
        $region40: #{tpu_custom_call.1} parent=35 // pred_fallthru
          _
        %s245 = sand.u32 %s25, 1
        %s246 = scalar_lea.sflag [#allocation6], %s245
        %s247 = sand.u32 %s54, 1
        %s248 = smul.addr %s247, 3136
        %s249 = scalar_lea.vmem [#allocation5], %s248
        // Predicated region
        $region41: #{tpu_custom_call.1} parent=35 // pred_check
          %p250 = pneg %p67
        $region42: #{tpu_custom_call.1} parent=35 // pred_check_branch
          %252 = sbr.rel (%p250) target = $region44
        $region43: #{tpu_custom_call.1} parent=35 // pred_region
          %253 = dma.done %s246, 50176
        $region44: #{tpu_custom_call.1} parent=35 // pred_fallthru
          _
        %s254 = sand.u32 %s25, 1
        %s255 = scalar_lea.sflag [#allocation6], %s254
        %s256 = sand.u32 %s80, 1
        %s257 = smul.addr %s256, 8
        %s258 = scalar_lea.vmem [#allocation7], %s257
        // Predicated region
        $region45: #{tpu_custom_call.1} parent=35 // pred_check
          %p259 = pneg %p93
        $region46: #{tpu_custom_call.1} parent=35 // pred_check_branch
          %261 = sbr.rel (%p259) target = $region48
        $region47: #{tpu_custom_call.1} parent=35 // pred_region
          %262 = dma.done %s255, 128
        $region48: #{tpu_custom_call.1} parent=35 // pred_fallthru
          _
        %s263 = sand.u32 %s106, 1
        %s264 = scalar_lea.sflag [#allocation9], %s263
        %s265 = sand.u32 %s106, 1
        %s266 = smul.addr %s265, 8
        %s267 = scalar_lea.vmem [#allocation8], %s266
        // Predicated region
        $region49: #{tpu_custom_call.1} parent=35 // pred_check
          %p268 = pneg %p119
        $region50: #{tpu_custom_call.1} parent=35 // pred_check_branch
          %270 = sbr.rel (%p268) target = $region52
        $region51: #{tpu_custom_call.1} parent=35 // pred_region
          %271 = dma.done %s264, 128
        $region52: #{tpu_custom_call.1} parent=35 // pred_fallthru
          _
        %p272 = pneg %p41
        %p273 = pneg %p38
        %s274 = sand.u32 %s25, 1
        %s275 = scalar_lea.sflag [#allocation6], %s274
        %s276 = sand.u32 %s54, 1
        %s277 = smul.addr %s276, 3136
        %s278 = scalar_lea.vmem [#allocation5], %s277
        %p279 = pneg %p67
        %p280 = pneg %p64
        %s281 = sand.u32 %s25, 1
        %s282 = scalar_lea.sflag [#allocation6], %s281
        %s283 = sand.u32 %s80, 1
        %s284 = smul.addr %s283, 8
        %s285 = scalar_lea.vmem [#allocation7], %s284
        %p286 = pneg %p93
        %p287 = pneg %p90
        %s288 = sand.u32 %s106, 1
        %s289 = scalar_lea.sflag [#allocation9], %s288
        %s290 = sand.u32 %s106, 1
        %s291 = smul.addr %s290, 8
        %s292 = scalar_lea.vmem [#allocation8], %s291
        %p293 = pneg %p119
        %p294 = pneg %p116
        %p295 = pneg %p145
        %p296 = pneg %p142
        %s297 = sand.u32 %s132, 1
        %s298 = scalar_lea.sflag [#allocation4], %s297
        %s299 = sand.u32 %s132, 1
        %s300 = smul.addr %s299, 32
        %s301 = scalar_lea.vmem [#allocation10], %s300
        %s302 = smul.u32 8, %s25
        %s303 = smul.u32 8, %s25
        %s304 = smul.u32 8, %s25
        %s305 = smul.u32 8, %s25
        %v306 = vld [vmem:[%s249] sm:$0xff]
        %v307 = vld [vmem:[%s249 + $0x8] sm:$0xff]
        %v308 = vld [vmem:[%s249 + $0x10] sm:$0xff]
        %v309 = vld [vmem:[%s249 + $0x18] sm:$0xff]
        %v310 = vld [vmem:[%s249 + $0x20] sm:$0xff]
        %v311 = vld [vmem:[%s249 + $0x28] sm:$0xff]
        %v312 = vld [vmem:[%s249 + $0x30] sm:$0xff]
        %v313 = vld [vmem:[%s249 + $0x38] sm:$0xff]
        %v314 = vld [vmem:[%s249 + $0x40] sm:$0xff]
        %v315 = vld [vmem:[%s249 + $0x48] sm:$0xff]
        %v316 = vld [vmem:[%s249 + $0x50] sm:$0xff]
        %v317 = vld [vmem:[%s249 + $0x58] sm:$0xff]
        %v318 = vld [vmem:[%s249 + $0x60] sm:$0xff]
        %v319 = vld [vmem:[%s249 + $0x68] sm:$0xff]
        %v320 = vld [vmem:[%s249 + $0x70] sm:$0xff]
        %v321 = vld [vmem:[%s249 + $0x78] sm:$0xff]
        %v322 = vld [vmem:[%s249 + $0x80] sm:$0xff]
        %v323 = vld [vmem:[%s249 + $0x88] sm:$0xff]
        %v324 = vld [vmem:[%s249 + $0x90] sm:$0xff]
        %v325 = vld [vmem:[%s249 + $0x98] sm:$0xff]
        %v326 = vld [vmem:[%s249 + $0xa0] sm:$0xff]
        %v327 = vld [vmem:[%s249 + $0xa8] sm:$0xff]
        %v328 = vld [vmem:[%s249 + $0xb0] sm:$0xff]
        %v329 = vld [vmem:[%s249 + $0xb8] sm:$0xff]
        %v330 = vld [vmem:[%s249 + $0xc0] sm:$0xff]
        %v331 = vld [vmem:[%s249 + $0xc8] sm:$0xff]
        %v332 = vld [vmem:[%s249 + $0xd0] sm:$0xff]
        %v333 = vld [vmem:[%s249 + $0xd8] sm:$0xff]
        %v334 = vld [vmem:[%s249 + $0xe0] sm:$0xff]
        %v335 = vld [vmem:[%s249 + $0xe8] sm:$0xff]
        %v336 = vld [vmem:[%s249 + $0xf0] sm:$0xff]
        %v337 = vld [vmem:[%s249 + $0xf8] sm:$0xff]
        %v338 = vld [vmem:[%s249 + $0x100] sm:$0xff]
        %v339 = vld [vmem:[%s249 + $0x108] sm:$0xff]
        %v340 = vld [vmem:[%s249 + $0x110] sm:$0xff]
        %v341 = vld [vmem:[%s249 + $0x118] sm:$0xff]
        %v342 = vld [vmem:[%s249 + $0x120] sm:$0xff]
        %v343 = vld [vmem:[%s249 + $0x128] sm:$0xff]
        %v344 = vld [vmem:[%s249 + $0x130] sm:$0xff]
        %v345 = vld [vmem:[%s249 + $0x138] sm:$0xff]
        %v346 = vld [vmem:[%s249 + $0x140] sm:$0xff]
        %v347 = vld [vmem:[%s249 + $0x148] sm:$0xff]
        %v348 = vld [vmem:[%s249 + $0x150] sm:$0xff]
        %v349 = vld [vmem:[%s249 + $0x158] sm:$0xff]
        %v350 = vld [vmem:[%s249 + $0x160] sm:$0xff]
        %v351 = vld [vmem:[%s249 + $0x168] sm:$0xff]
        %v352 = vld [vmem:[%s249 + $0x170] sm:$0xff]
        %v353 = vld [vmem:[%s249 + $0x178] sm:$0xff]
        %v354 = vld [vmem:[%s249 + $0x180] sm:$0xff]
        %v355 = vld [vmem:[%s249 + $0x188] sm:$0xff]
        %v356 = vld [vmem:[%s249 + $0x190] sm:$0xff]
        %v357 = vld [vmem:[%s249 + $0x198] sm:$0xff]
        %v358 = vld [vmem:[%s249 + $0x1a0] sm:$0xff]
        %v359 = vld [vmem:[%s249 + $0x1a8] sm:$0xff]
        %v360 = vld [vmem:[%s249 + $0x1b0] sm:$0xff]
        %v361 = vld [vmem:[%s249 + $0x1b8] sm:$0xff]
        %v362 = vld [vmem:[%s249 + $0x1c0] sm:$0xff]
        %v363 = vld [vmem:[%s249 + $0x1c8] sm:$0xff]
        %v364 = vld [vmem:[%s249 + $0x1d0] sm:$0xff]
        %v365 = vld [vmem:[%s249 + $0x1d8] sm:$0xff]
        %v366 = vld [vmem:[%s249 + $0x1e0] sm:$0xff]
        %v367 = vld [vmem:[%s249 + $0x1e8] sm:$0xff]
        %v368 = vld [vmem:[%s249 + $0x1f0] sm:$0xff]
        %v369 = vld [vmem:[%s249 + $0x1f8] sm:$0xff]
        %v370 = vld [vmem:[%s249 + $0x200] sm:$0xff]
        %v371 = vld [vmem:[%s249 + $0x208] sm:$0xff]
        %v372 = vld [vmem:[%s249 + $0x210] sm:$0xff]
        %v373 = vld [vmem:[%s249 + $0x218] sm:$0xff]
        %v374 = vld [vmem:[%s249 + $0x220] sm:$0xff]
        %v375 = vld [vmem:[%s249 + $0x228] sm:$0xff]
        %v376 = vld [vmem:[%s249 + $0x230] sm:$0xff]
        %v377 = vld [vmem:[%s249 + $0x238] sm:$0xff]
        %v378 = vld [vmem:[%s249 + $0x240] sm:$0xff]
        %v379 = vld [vmem:[%s249 + $0x248] sm:$0xff]
        %v380 = vld [vmem:[%s249 + $0x250] sm:$0xff]
        %v381 = vld [vmem:[%s249 + $0x258] sm:$0xff]
        %v382 = vld [vmem:[%s249 + $0x260] sm:$0xff]
        %v383 = vld [vmem:[%s249 + $0x268] sm:$0xff]
        %v384 = vld [vmem:[%s249 + $0x270] sm:$0xff]
        %v385 = vld [vmem:[%s249 + $0x278] sm:$0xff]
        %v386 = vld [vmem:[%s249 + $0x280] sm:$0xff]
        %v387 = vld [vmem:[%s249 + $0x288] sm:$0xff]
        %v388 = vld [vmem:[%s249 + $0x290] sm:$0xff]
        %v389 = vld [vmem:[%s249 + $0x298] sm:$0xff]
        %v390 = vld [vmem:[%s249 + $0x2a0] sm:$0xff]
        %v391 = vld [vmem:[%s249 + $0x2a8] sm:$0xff]
        %v392 = vld [vmem:[%s249 + $0x2b0] sm:$0xff]
        %v393 = vld [vmem:[%s249 + $0x2b8] sm:$0xff]
        %v394 = vld [vmem:[%s249 + $0x2c0] sm:$0xff]
        %v395 = vld [vmem:[%s249 + $0x2c8] sm:$0xff]
        %v396 = vld [vmem:[%s249 + $0x2d0] sm:$0xff]
        %v397 = vld [vmem:[%s249 + $0x2d8] sm:$0xff]
        %v398 = vld [vmem:[%s249 + $0x2e0] sm:$0xff]
        %v399 = vld [vmem:[%s249 + $0x2e8] sm:$0xff]
        %v400 = vld [vmem:[%s249 + $0x2f0] sm:$0xff]
        %v401 = vld [vmem:[%s249 + $0x2f8] sm:$0xff]
        %v402 = vld [vmem:[%s249 + $0x300] sm:$0xff]
        %v403 = vld [vmem:[%s249 + $0x308] sm:$0xff]
        %v404 = vld [vmem:[%s249 + $0x310] sm:$0xff]
        %v405 = vld [vmem:[%s249 + $0x318] sm:$0xff]
        %v406 = vld [vmem:[%s249 + $0x320] sm:$0xff]
        %v407 = vld [vmem:[%s249 + $0x328] sm:$0xff]
        %v408 = vld [vmem:[%s249 + $0x330] sm:$0xff]
        %v409 = vld [vmem:[%s249 + $0x338] sm:$0xff]
        %v410 = vld [vmem:[%s249 + $0x340] sm:$0xff]
        %v411 = vld [vmem:[%s249 + $0x348] sm:$0xff]
        %v412 = vld [vmem:[%s249 + $0x350] sm:$0xff]
        %v413 = vld [vmem:[%s249 + $0x358] sm:$0xff]
        %v414 = vld [vmem:[%s249 + $0x360] sm:$0xff]
        %v415 = vld [vmem:[%s249 + $0x368] sm:$0xff]
        %v416 = vld [vmem:[%s249 + $0x370] sm:$0xff]
        %v417 = vld [vmem:[%s249 + $0x378] sm:$0xff]
        %v418 = vld [vmem:[%s249 + $0x380] sm:$0xff]
        %v419 = vld [vmem:[%s249 + $0x388] sm:$0xff]
        %v420 = vld [vmem:[%s249 + $0x390] sm:$0xff]
        %v421 = vld [vmem:[%s249 + $0x398] sm:$0xff]
        %v422 = vld [vmem:[%s249 + $0x3a0] sm:$0xff]
        %v423 = vld [vmem:[%s249 + $0x3a8] sm:$0xff]
        %v424 = vld [vmem:[%s249 + $0x3b0] sm:$0xff]
        %v425 = vld [vmem:[%s249 + $0x3b8] sm:$0xff]
        %v426 = vld [vmem:[%s249 + $0x3c0] sm:$0xff]
        %v427 = vld [vmem:[%s249 + $0x3c8] sm:$0xff]
        %v428 = vld [vmem:[%s249 + $0x3d0] sm:$0xff]
        %v429 = vld [vmem:[%s249 + $0x3d8] sm:$0xff]
        %v430 = vld [vmem:[%s249 + $0x3e0] sm:$0xff]
        %v431 = vld [vmem:[%s249 + $0x3e8] sm:$0xff]
        %v432 = vld [vmem:[%s249 + $0x3f0] sm:$0xff]
        %v433 = vld [vmem:[%s249 + $0x3f8] sm:$0xff]
        %v434 = vld [vmem:[%s249 + $0x400] sm:$0xff]
        %v435 = vld [vmem:[%s249 + $0x408] sm:$0xff]
        %v436 = vld [vmem:[%s249 + $0x410] sm:$0xff]
        %v437 = vld [vmem:[%s249 + $0x418] sm:$0xff]
        %v438 = vld [vmem:[%s249 + $0x420] sm:$0xff]
        %v439 = vld [vmem:[%s249 + $0x428] sm:$0xff]
        %v440 = vld [vmem:[%s249 + $0x430] sm:$0xff]
        %v441 = vld [vmem:[%s249 + $0x438] sm:$0xff]
        %v442 = vld [vmem:[%s249 + $0x440] sm:$0xff]
        %v443 = vld [vmem:[%s249 + $0x448] sm:$0xff]
        %v444 = vld [vmem:[%s249 + $0x450] sm:$0xff]
        %v445 = vld [vmem:[%s249 + $0x458] sm:$0xff]
        %v446 = vld [vmem:[%s249 + $0x460] sm:$0xff]
        %v447 = vld [vmem:[%s249 + $0x468] sm:$0xff]
        %v448 = vld [vmem:[%s249 + $0x470] sm:$0xff]
        %v449 = vld [vmem:[%s249 + $0x478] sm:$0xff]
        %v450 = vld [vmem:[%s249 + $0x480] sm:$0xff]
        %v451 = vld [vmem:[%s249 + $0x488] sm:$0xff]
        %v452 = vld [vmem:[%s249 + $0x490] sm:$0xff]
        %v453 = vld [vmem:[%s249 + $0x498] sm:$0xff]
        %v454 = vld [vmem:[%s249 + $0x4a0] sm:$0xff]
        %v455 = vld [vmem:[%s249 + $0x4a8] sm:$0xff]
        %v456 = vld [vmem:[%s249 + $0x4b0] sm:$0xff]
        %v457 = vld [vmem:[%s249 + $0x4b8] sm:$0xff]
        %v458 = vld [vmem:[%s249 + $0x4c0] sm:$0xff]
        %v459 = vld [vmem:[%s249 + $0x4c8] sm:$0xff]
        %v460 = vld [vmem:[%s249 + $0x4d0] sm:$0xff]
        %v461 = vld [vmem:[%s249 + $0x4d8] sm:$0xff]
        %v462 = vld [vmem:[%s249 + $0x4e0] sm:$0xff]
        %v463 = vld [vmem:[%s249 + $0x4e8] sm:$0xff]
        %v464 = vld [vmem:[%s249 + $0x4f0] sm:$0xff]
        %v465 = vld [vmem:[%s249 + $0x4f8] sm:$0xff]
        %v466 = vld [vmem:[%s249 + $0x500] sm:$0xff]
        %v467 = vld [vmem:[%s249 + $0x508] sm:$0xff]
        %v468 = vld [vmem:[%s249 + $0x510] sm:$0xff]
        %v469 = vld [vmem:[%s249 + $0x518] sm:$0xff]
        %v470 = vld [vmem:[%s249 + $0x520] sm:$0xff]
        %v471 = vld [vmem:[%s249 + $0x528] sm:$0xff]
        %v472 = vld [vmem:[%s249 + $0x530] sm:$0xff]
        %v473 = vld [vmem:[%s249 + $0x538] sm:$0xff]
        %v474 = vld [vmem:[%s249 + $0x540] sm:$0xff]
        %v475 = vld [vmem:[%s249 + $0x548] sm:$0xff]
        %v476 = vld [vmem:[%s249 + $0x550] sm:$0xff]
        %v477 = vld [vmem:[%s249 + $0x558] sm:$0xff]
        %v478 = vld [vmem:[%s249 + $0x560] sm:$0xff]
        %v479 = vld [vmem:[%s249 + $0x568] sm:$0xff]
        %v480 = vld [vmem:[%s249 + $0x570] sm:$0xff]
        %v481 = vld [vmem:[%s249 + $0x578] sm:$0xff]
        %v482 = vld [vmem:[%s249 + $0x580] sm:$0xff]
        %v483 = vld [vmem:[%s249 + $0x588] sm:$0xff]
        %v484 = vld [vmem:[%s249 + $0x590] sm:$0xff]
        %v485 = vld [vmem:[%s249 + $0x598] sm:$0xff]
        %v486 = vld [vmem:[%s249 + $0x5a0] sm:$0xff]
        %v487 = vld [vmem:[%s249 + $0x5a8] sm:$0xff]
        %v488 = vld [vmem:[%s249 + $0x5b0] sm:$0xff]
        %v489 = vld [vmem:[%s249 + $0x5b8] sm:$0xff]
        %v490 = vld [vmem:[%s249 + $0x5c0] sm:$0xff]
        %v491 = vld [vmem:[%s249 + $0x5c8] sm:$0xff]
        %v492 = vld [vmem:[%s249 + $0x5d0] sm:$0xff]
        %v493 = vld [vmem:[%s249 + $0x5d8] sm:$0xff]
        %v494 = vld [vmem:[%s249 + $0x5e0] sm:$0xff]
        %v495 = vld [vmem:[%s249 + $0x5e8] sm:$0xff]
        %v496 = vld [vmem:[%s249 + $0x5f0] sm:$0xff]
        %v497 = vld [vmem:[%s249 + $0x5f8] sm:$0xff]
        %v498 = vld [vmem:[%s249 + $0x600] sm:$0xff]
        %v499 = vld [vmem:[%s249 + $0x608] sm:$0xff]
        %v500 = vld [vmem:[%s249 + $0x610] sm:$0xff]
        %v501 = vld [vmem:[%s249 + $0x618] sm:$0xff]
        %v502 = vld [vmem:[%s249 + $0x620] sm:$0xff]
        %v503 = vld [vmem:[%s249 + $0x628] sm:$0xff]
        %v504 = vld [vmem:[%s249 + $0x630] sm:$0xff]
        %v505 = vld [vmem:[%s249 + $0x638] sm:$0xff]
        %v506 = vld [vmem:[%s249 + $0x640] sm:$0xff]
        %v507 = vld [vmem:[%s249 + $0x648] sm:$0xff]
        %v508 = vld [vmem:[%s249 + $0x650] sm:$0xff]
        %v509 = vld [vmem:[%s249 + $0x658] sm:$0xff]
        %v510 = vld [vmem:[%s249 + $0x660] sm:$0xff]
        %v511 = vld [vmem:[%s249 + $0x668] sm:$0xff]
        %v512 = vld [vmem:[%s249 + $0x670] sm:$0xff]
        %v513 = vld [vmem:[%s249 + $0x678] sm:$0xff]
        %v514 = vld [vmem:[%s249 + $0x680] sm:$0xff]
        %v515 = vld [vmem:[%s249 + $0x688] sm:$0xff]
        %v516 = vld [vmem:[%s249 + $0x690] sm:$0xff]
        %v517 = vld [vmem:[%s249 + $0x698] sm:$0xff]
        %v518 = vld [vmem:[%s249 + $0x6a0] sm:$0xff]
        %v519 = vld [vmem:[%s249 + $0x6a8] sm:$0xff]
        %v520 = vld [vmem:[%s249 + $0x6b0] sm:$0xff]
        %v521 = vld [vmem:[%s249 + $0x6b8] sm:$0xff]
        %v522 = vld [vmem:[%s249 + $0x6c0] sm:$0xff]
        %v523 = vld [vmem:[%s249 + $0x6c8] sm:$0xff]
        %v524 = vld [vmem:[%s249 + $0x6d0] sm:$0xff]
        %v525 = vld [vmem:[%s249 + $0x6d8] sm:$0xff]
        %v526 = vld [vmem:[%s249 + $0x6e0] sm:$0xff]
        %v527 = vld [vmem:[%s249 + $0x6e8] sm:$0xff]
        %v528 = vld [vmem:[%s249 + $0x6f0] sm:$0xff]
        %v529 = vld [vmem:[%s249 + $0x6f8] sm:$0xff]
        %v530 = vld [vmem:[%s249 + $0x700] sm:$0xff]
        %v531 = vld [vmem:[%s249 + $0x708] sm:$0xff]
        %v532 = vld [vmem:[%s249 + $0x710] sm:$0xff]
        %v533 = vld [vmem:[%s249 + $0x718] sm:$0xff]
        %v534 = vld [vmem:[%s249 + $0x720] sm:$0xff]
        %v535 = vld [vmem:[%s249 + $0x728] sm:$0xff]
        %v536 = vld [vmem:[%s249 + $0x730] sm:$0xff]
        %v537 = vld [vmem:[%s249 + $0x738] sm:$0xff]
        %v538 = vld [vmem:[%s249 + $0x740] sm:$0xff]
        %v539 = vld [vmem:[%s249 + $0x748] sm:$0xff]
        %v540 = vld [vmem:[%s249 + $0x750] sm:$0xff]
        %v541 = vld [vmem:[%s249 + $0x758] sm:$0xff]
        %v542 = vld [vmem:[%s249 + $0x760] sm:$0xff]
        %v543 = vld [vmem:[%s249 + $0x768] sm:$0xff]
        %v544 = vld [vmem:[%s249 + $0x770] sm:$0xff]
        %v545 = vld [vmem:[%s249 + $0x778] sm:$0xff]
        %v546 = vld [vmem:[%s249 + $0x780] sm:$0xff]
        %v547 = vld [vmem:[%s249 + $0x788] sm:$0xff]
        %v548 = vld [vmem:[%s249 + $0x790] sm:$0xff]
        %v549 = vld [vmem:[%s249 + $0x798] sm:$0xff]
        %v550 = vld [vmem:[%s249 + $0x7a0] sm:$0xff]
        %v551 = vld [vmem:[%s249 + $0x7a8] sm:$0xff]
        %v552 = vld [vmem:[%s249 + $0x7b0] sm:$0xff]
        %v553 = vld [vmem:[%s249 + $0x7b8] sm:$0xff]
        %v554 = vld [vmem:[%s249 + $0x7c0] sm:$0xff]
        %v555 = vld [vmem:[%s249 + $0x7c8] sm:$0xff]
        %v556 = vld [vmem:[%s249 + $0x7d0] sm:$0xff]
        %v557 = vld [vmem:[%s249 + $0x7d8] sm:$0xff]
        %v558 = vld [vmem:[%s249 + $0x7e0] sm:$0xff]
        %v559 = vld [vmem:[%s249 + $0x7e8] sm:$0xff]
        %v560 = vld [vmem:[%s249 + $0x7f0] sm:$0xff]
        %v561 = vld [vmem:[%s249 + $0x7f8] sm:$0xff]
        %v562 = vld [vmem:[%s249 + $0x800] sm:$0xff]
        %v563 = vld [vmem:[%s249 + $0x808] sm:$0xff]
        %v564 = vld [vmem:[%s249 + $0x810] sm:$0xff]
        %v565 = vld [vmem:[%s249 + $0x818] sm:$0xff]
        %v566 = vld [vmem:[%s249 + $0x820] sm:$0xff]
        %v567 = vld [vmem:[%s249 + $0x828] sm:$0xff]
        %v568 = vld [vmem:[%s249 + $0x830] sm:$0xff]
        %v569 = vld [vmem:[%s249 + $0x838] sm:$0xff]
        %v570 = vld [vmem:[%s249 + $0x840] sm:$0xff]
        %v571 = vld [vmem:[%s249 + $0x848] sm:$0xff]
        %v572 = vld [vmem:[%s249 + $0x850] sm:$0xff]
        %v573 = vld [vmem:[%s249 + $0x858] sm:$0xff]
        %v574 = vld [vmem:[%s249 + $0x860] sm:$0xff]
        %v575 = vld [vmem:[%s249 + $0x868] sm:$0xff]
        %v576 = vld [vmem:[%s249 + $0x870] sm:$0xff]
        %v577 = vld [vmem:[%s249 + $0x878] sm:$0xff]
        %v578 = vld [vmem:[%s249 + $0x880] sm:$0xff]
        %v579 = vld [vmem:[%s249 + $0x888] sm:$0xff]
        %v580 = vld [vmem:[%s249 + $0x890] sm:$0xff]
        %v581 = vld [vmem:[%s249 + $0x898] sm:$0xff]
        %v582 = vld [vmem:[%s249 + $0x8a0] sm:$0xff]
        %v583 = vld [vmem:[%s249 + $0x8a8] sm:$0xff]
        %v584 = vld [vmem:[%s249 + $0x8b0] sm:$0xff]
        %v585 = vld [vmem:[%s249 + $0x8b8] sm:$0xff]
        %v586 = vld [vmem:[%s249 + $0x8c0] sm:$0xff]
        %v587 = vld [vmem:[%s249 + $0x8c8] sm:$0xff]
        %v588 = vld [vmem:[%s249 + $0x8d0] sm:$0xff]
        %v589 = vld [vmem:[%s249 + $0x8d8] sm:$0xff]
        %v590 = vld [vmem:[%s249 + $0x8e0] sm:$0xff]
        %v591 = vld [vmem:[%s249 + $0x8e8] sm:$0xff]
        %v592 = vld [vmem:[%s249 + $0x8f0] sm:$0xff]
        %v593 = vld [vmem:[%s249 + $0x8f8] sm:$0xff]
        %v594 = vld [vmem:[%s249 + $0x900] sm:$0xff]
        %v595 = vld [vmem:[%s249 + $0x908] sm:$0xff]
        %v596 = vld [vmem:[%s249 + $0x910] sm:$0xff]
        %v597 = vld [vmem:[%s249 + $0x918] sm:$0xff]
        %v598 = vld [vmem:[%s249 + $0x920] sm:$0xff]
        %v599 = vld [vmem:[%s249 + $0x928] sm:$0xff]
        %v600 = vld [vmem:[%s249 + $0x930] sm:$0xff]
        %v601 = vld [vmem:[%s249 + $0x938] sm:$0xff]
        %v602 = vld [vmem:[%s249 + $0x940] sm:$0xff]
        %v603 = vld [vmem:[%s249 + $0x948] sm:$0xff]
        %v604 = vld [vmem:[%s249 + $0x950] sm:$0xff]
        %v605 = vld [vmem:[%s249 + $0x958] sm:$0xff]
        %v606 = vld [vmem:[%s249 + $0x960] sm:$0xff]
        %v607 = vld [vmem:[%s249 + $0x968] sm:$0xff]
        %v608 = vld [vmem:[%s249 + $0x970] sm:$0xff]
        %v609 = vld [vmem:[%s249 + $0x978] sm:$0xff]
        %v610 = vld [vmem:[%s249 + $0x980] sm:$0xff]
        %v611 = vld [vmem:[%s249 + $0x988] sm:$0xff]
        %v612 = vld [vmem:[%s249 + $0x990] sm:$0xff]
        %v613 = vld [vmem:[%s249 + $0x998] sm:$0xff]
        %v614 = vld [vmem:[%s249 + $0x9a0] sm:$0xff]
        %v615 = vld [vmem:[%s249 + $0x9a8] sm:$0xff]
        %v616 = vld [vmem:[%s249 + $0x9b0] sm:$0xff]
        %v617 = vld [vmem:[%s249 + $0x9b8] sm:$0xff]
        %v618 = vld [vmem:[%s249 + $0x9c0] sm:$0xff]
        %v619 = vld [vmem:[%s249 + $0x9c8] sm:$0xff]
        %v620 = vld [vmem:[%s249 + $0x9d0] sm:$0xff]
        %v621 = vld [vmem:[%s249 + $0x9d8] sm:$0xff]
        %v622 = vld [vmem:[%s249 + $0x9e0] sm:$0xff]
        %v623 = vld [vmem:[%s249 + $0x9e8] sm:$0xff]
        %v624 = vld [vmem:[%s249 + $0x9f0] sm:$0xff]
        %v625 = vld [vmem:[%s249 + $0x9f8] sm:$0xff]
        %v626 = vld [vmem:[%s249 + $0xa00] sm:$0xff]
        %v627 = vld [vmem:[%s249 + $0xa08] sm:$0xff]
        %v628 = vld [vmem:[%s249 + $0xa10] sm:$0xff]
        %v629 = vld [vmem:[%s249 + $0xa18] sm:$0xff]
        %v630 = vld [vmem:[%s249 + $0xa20] sm:$0xff]
        %v631 = vld [vmem:[%s249 + $0xa28] sm:$0xff]
        %v632 = vld [vmem:[%s249 + $0xa30] sm:$0xff]
        %v633 = vld [vmem:[%s249 + $0xa38] sm:$0xff]
        %v634 = vld [vmem:[%s249 + $0xa40] sm:$0xff]
        %v635 = vld [vmem:[%s249 + $0xa48] sm:$0xff]
        %v636 = vld [vmem:[%s249 + $0xa50] sm:$0xff]
        %v637 = vld [vmem:[%s249 + $0xa58] sm:$0xff]
        %v638 = vld [vmem:[%s249 + $0xa60] sm:$0xff]
        %v639 = vld [vmem:[%s249 + $0xa68] sm:$0xff]
        %v640 = vld [vmem:[%s249 + $0xa70] sm:$0xff]
        %v641 = vld [vmem:[%s249 + $0xa78] sm:$0xff]
        %v642 = vld [vmem:[%s249 + $0xa80] sm:$0xff]
        %v643 = vld [vmem:[%s249 + $0xa88] sm:$0xff]
        %v644 = vld [vmem:[%s249 + $0xa90] sm:$0xff]
        %v645 = vld [vmem:[%s249 + $0xa98] sm:$0xff]
        %v646 = vld [vmem:[%s249 + $0xaa0] sm:$0xff]
        %v647 = vld [vmem:[%s249 + $0xaa8] sm:$0xff]
        %v648 = vld [vmem:[%s249 + $0xab0] sm:$0xff]
        %v649 = vld [vmem:[%s249 + $0xab8] sm:$0xff]
        %v650 = vld [vmem:[%s249 + $0xac0] sm:$0xff]
        %v651 = vld [vmem:[%s249 + $0xac8] sm:$0xff]
        %v652 = vld [vmem:[%s249 + $0xad0] sm:$0xff]
        %v653 = vld [vmem:[%s249 + $0xad8] sm:$0xff]
        %v654 = vld [vmem:[%s249 + $0xae0] sm:$0xff]
        %v655 = vld [vmem:[%s249 + $0xae8] sm:$0xff]
        %v656 = vld [vmem:[%s249 + $0xaf0] sm:$0xff]
        %v657 = vld [vmem:[%s249 + $0xaf8] sm:$0xff]
        %v658 = vld [vmem:[%s249 + $0xb00] sm:$0xff]
        %v659 = vld [vmem:[%s249 + $0xb08] sm:$0xff]
        %v660 = vld [vmem:[%s249 + $0xb10] sm:$0xff]
        %v661 = vld [vmem:[%s249 + $0xb18] sm:$0xff]
        %v662 = vld [vmem:[%s249 + $0xb20] sm:$0xff]
        %v663 = vld [vmem:[%s249 + $0xb28] sm:$0xff]
        %v664 = vld [vmem:[%s249 + $0xb30] sm:$0xff]
        %v665 = vld [vmem:[%s249 + $0xb38] sm:$0xff]
        %v666 = vld [vmem:[%s249 + $0xb40] sm:$0xff]
        %v667 = vld [vmem:[%s249 + $0xb48] sm:$0xff]
        %v668 = vld [vmem:[%s249 + $0xb50] sm:$0xff]
        %v669 = vld [vmem:[%s249 + $0xb58] sm:$0xff]
        %v670 = vld [vmem:[%s249 + $0xb60] sm:$0xff]
        %v671 = vld [vmem:[%s249 + $0xb68] sm:$0xff]
        %v672 = vld [vmem:[%s249 + $0xb70] sm:$0xff]
        %v673 = vld [vmem:[%s249 + $0xb78] sm:$0xff]
        %v674 = vld [vmem:[%s249 + $0xb80] sm:$0xff]
        %v675 = vld [vmem:[%s249 + $0xb88] sm:$0xff]
        %v676 = vld [vmem:[%s249 + $0xb90] sm:$0xff]
        %v677 = vld [vmem:[%s249 + $0xb98] sm:$0xff]
        %v678 = vld [vmem:[%s249 + $0xba0] sm:$0xff]
        %v679 = vld [vmem:[%s249 + $0xba8] sm:$0xff]
        %v680 = vld [vmem:[%s249 + $0xbb0] sm:$0xff]
        %v681 = vld [vmem:[%s249 + $0xbb8] sm:$0xff]
        %v682 = vld [vmem:[%s249 + $0xbc0] sm:$0xff]
        %v683 = vld [vmem:[%s249 + $0xbc8] sm:$0xff]
        %v684 = vld [vmem:[%s249 + $0xbd0] sm:$0xff]
        %v685 = vld [vmem:[%s249 + $0xbd8] sm:$0xff]
        %v686 = vld [vmem:[%s249 + $0xbe0] sm:$0xff]
        %v687 = vld [vmem:[%s249 + $0xbe8] sm:$0xff]
        %v688 = vld [vmem:[%s249 + $0xbf0] sm:$0xff]
        %v689 = vld [vmem:[%s249 + $0xbf8] sm:$0xff]
        %v690 = vld [vmem:[%s249 + $0xc00] sm:$0xff]
        %v691 = vld [vmem:[%s249 + $0xc08] sm:$0xff]
        %v692 = vld [vmem:[%s249 + $0xc10] sm:$0xff]
        %v693 = vld [vmem:[%s249 + $0xc18] sm:$0xff]
        %v694 = vld [vmem:[%s249 + $0xc20] sm:$0xff]
        %v695 = vld [vmem:[%s249 + $0xc28] sm:$0xff]
        %v696 = vld [vmem:[%s249 + $0xc30] sm:$0xff]
        %v697 = vld [vmem:[%s249 + $0xc38] sm:$0xff]
        %v698 = vunpack.c.l.bf16 %v306
        %v699 = vunpack.c.h.bf16 %v306
        %v700 = vunpack.c.l.bf16 %v307
        %v701 = vunpack.c.h.bf16 %v307
        %v702 = vunpack.c.l.bf16 %v308
        %v703 = vunpack.c.h.bf16 %v308
        %v704 = vunpack.c.l.bf16 %v309
        %v705 = vunpack.c.h.bf16 %v309
        %v706 = vunpack.c.l.bf16 %v310
        %v707 = vunpack.c.h.bf16 %v310
        %v708 = vunpack.c.l.bf16 %v311
        %v709 = vunpack.c.h.bf16 %v311
        %v710 = vunpack.c.l.bf16 %v312
        %v711 = vunpack.c.h.bf16 %v312
        %v712 = vunpack.c.l.bf16 %v313
        %v713 = vunpack.c.h.bf16 %v313
        %v714 = vunpack.c.l.bf16 %v314
        %v715 = vunpack.c.h.bf16 %v314
        %v716 = vunpack.c.l.bf16 %v315
        %v717 = vunpack.c.h.bf16 %v315
        %v718 = vunpack.c.l.bf16 %v316
        %v719 = vunpack.c.h.bf16 %v316
        %v720 = vunpack.c.l.bf16 %v317
        %v721 = vunpack.c.h.bf16 %v317
        %v722 = vunpack.c.l.bf16 %v318
        %v723 = vunpack.c.h.bf16 %v318
        %v724 = vunpack.c.l.bf16 %v319
        %v725 = vunpack.c.h.bf16 %v319
        %v726 = vunpack.c.l.bf16 %v320
        %v727 = vunpack.c.h.bf16 %v320
        %v728 = vunpack.c.l.bf16 %v321
        %v729 = vunpack.c.h.bf16 %v321
        %v730 = vunpack.c.l.bf16 %v322
        %v731 = vunpack.c.h.bf16 %v322
        %v732 = vunpack.c.l.bf16 %v323
        %v733 = vunpack.c.h.bf16 %v323
        %v734 = vunpack.c.l.bf16 %v324
        %v735 = vunpack.c.h.bf16 %v324
        %v736 = vunpack.c.l.bf16 %v325
        %v737 = vunpack.c.h.bf16 %v325
        %v738 = vunpack.c.l.bf16 %v326
        %v739 = vunpack.c.h.bf16 %v326
        %v740 = vunpack.c.l.bf16 %v327
        %v741 = vunpack.c.h.bf16 %v327
        %v742 = vunpack.c.l.bf16 %v328
        %v743 = vunpack.c.h.bf16 %v328
        %v744 = vunpack.c.l.bf16 %v329
        %v745 = vunpack.c.h.bf16 %v329
        %v746 = vunpack.c.l.bf16 %v330
        %v747 = vunpack.c.h.bf16 %v330
        %v748 = vunpack.c.l.bf16 %v331
        %v749 = vunpack.c.h.bf16 %v331
        %v750 = vunpack.c.l.bf16 %v332
        %v751 = vunpack.c.h.bf16 %v332
        %v752 = vunpack.c.l.bf16 %v333
        %v753 = vunpack.c.h.bf16 %v333
        %v754 = vunpack.c.l.bf16 %v334
        %v755 = vunpack.c.h.bf16 %v334
        %v756 = vunpack.c.l.bf16 %v335
        %v757 = vunpack.c.h.bf16 %v335
        %v758 = vunpack.c.l.bf16 %v336
        %v759 = vunpack.c.h.bf16 %v336
        %v760 = vunpack.c.l.bf16 %v337
        %v761 = vunpack.c.h.bf16 %v337
        %v762 = vunpack.c.l.bf16 %v338
        %v763 = vunpack.c.h.bf16 %v338
        %v764 = vunpack.c.l.bf16 %v339
        %v765 = vunpack.c.h.bf16 %v339
        %v766 = vunpack.c.l.bf16 %v340
        %v767 = vunpack.c.h.bf16 %v340
        %v768 = vunpack.c.l.bf16 %v341
        %v769 = vunpack.c.h.bf16 %v341
        %v770 = vunpack.c.l.bf16 %v342
        %v771 = vunpack.c.h.bf16 %v342
        %v772 = vunpack.c.l.bf16 %v343
        %v773 = vunpack.c.h.bf16 %v343
        %v774 = vunpack.c.l.bf16 %v344
        %v775 = vunpack.c.h.bf16 %v344
        %v776 = vunpack.c.l.bf16 %v345
        %v777 = vunpack.c.h.bf16 %v345
        %v778 = vunpack.c.l.bf16 %v346
        %v779 = vunpack.c.h.bf16 %v346
        %v780 = vunpack.c.l.bf16 %v347
        %v781 = vunpack.c.h.bf16 %v347
        %v782 = vunpack.c.l.bf16 %v348
        %v783 = vunpack.c.h.bf16 %v348
        %v784 = vunpack.c.l.bf16 %v349
        %v785 = vunpack.c.h.bf16 %v349
        %v786 = vunpack.c.l.bf16 %v350
        %v787 = vunpack.c.h.bf16 %v350
        %v788 = vunpack.c.l.bf16 %v351
        %v789 = vunpack.c.h.bf16 %v351
        %v790 = vunpack.c.l.bf16 %v352
        %v791 = vunpack.c.h.bf16 %v352
        %v792 = vunpack.c.l.bf16 %v353
        %v793 = vunpack.c.h.bf16 %v353
        %v794 = vunpack.c.l.bf16 %v354
        %v795 = vunpack.c.h.bf16 %v354
        %v796 = vunpack.c.l.bf16 %v355
        %v797 = vunpack.c.h.bf16 %v355
        %v798 = vunpack.c.l.bf16 %v356
        %v799 = vunpack.c.h.bf16 %v356
        %v800 = vunpack.c.l.bf16 %v357
        %v801 = vunpack.c.h.bf16 %v357
        %v802 = vunpack.c.l.bf16 %v358
        %v803 = vunpack.c.h.bf16 %v358
        %v804 = vunpack.c.l.bf16 %v359
        %v805 = vunpack.c.h.bf16 %v359
        %v806 = vunpack.c.l.bf16 %v360
        %v807 = vunpack.c.h.bf16 %v360
        %v808 = vunpack.c.l.bf16 %v361
        %v809 = vunpack.c.h.bf16 %v361
        %v810 = vunpack.c.l.bf16 %v362
        %v811 = vunpack.c.h.bf16 %v362
        %v812 = vunpack.c.l.bf16 %v363
        %v813 = vunpack.c.h.bf16 %v363
        %v814 = vunpack.c.l.bf16 %v364
        %v815 = vunpack.c.h.bf16 %v364
        %v816 = vunpack.c.l.bf16 %v365
        %v817 = vunpack.c.h.bf16 %v365
        %v818 = vunpack.c.l.bf16 %v366
        %v819 = vunpack.c.h.bf16 %v366
        %v820 = vunpack.c.l.bf16 %v367
        %v821 = vunpack.c.h.bf16 %v367
        %v822 = vunpack.c.l.bf16 %v368
        %v823 = vunpack.c.h.bf16 %v368
        %v824 = vunpack.c.l.bf16 %v369
        %v825 = vunpack.c.h.bf16 %v369
        %v826 = vunpack.c.l.bf16 %v370
        %v827 = vunpack.c.h.bf16 %v370
        %v828 = vunpack.c.l.bf16 %v371
        %v829 = vunpack.c.h.bf16 %v371
        %v830 = vunpack.c.l.bf16 %v372
        %v831 = vunpack.c.h.bf16 %v372
        %v832 = vunpack.c.l.bf16 %v373
        %v833 = vunpack.c.h.bf16 %v373
        %v834 = vunpack.c.l.bf16 %v374
        %v835 = vunpack.c.h.bf16 %v374
        %v836 = vunpack.c.l.bf16 %v375
        %v837 = vunpack.c.h.bf16 %v375
        %v838 = vunpack.c.l.bf16 %v376
        %v839 = vunpack.c.h.bf16 %v376
        %v840 = vunpack.c.l.bf16 %v377
        %v841 = vunpack.c.h.bf16 %v377
        %v842 = vunpack.c.l.bf16 %v378
        %v843 = vunpack.c.h.bf16 %v378
        %v844 = vunpack.c.l.bf16 %v379
        %v845 = vunpack.c.h.bf16 %v379
        %v846 = vunpack.c.l.bf16 %v380
        %v847 = vunpack.c.h.bf16 %v380
        %v848 = vunpack.c.l.bf16 %v381
        %v849 = vunpack.c.h.bf16 %v381
        %v850 = vunpack.c.l.bf16 %v382
        %v851 = vunpack.c.h.bf16 %v382
        %v852 = vunpack.c.l.bf16 %v383
        %v853 = vunpack.c.h.bf16 %v383
        %v854 = vunpack.c.l.bf16 %v384
        %v855 = vunpack.c.h.bf16 %v384
        %v856 = vunpack.c.l.bf16 %v385
        %v857 = vunpack.c.h.bf16 %v385
        %v858 = vunpack.c.l.bf16 %v386
        %v859 = vunpack.c.h.bf16 %v386
        %v860 = vunpack.c.l.bf16 %v387
        %v861 = vunpack.c.h.bf16 %v387
        %v862 = vunpack.c.l.bf16 %v388
        %v863 = vunpack.c.h.bf16 %v388
        %v864 = vunpack.c.l.bf16 %v389
        %v865 = vunpack.c.h.bf16 %v389
        %v866 = vunpack.c.l.bf16 %v390
        %v867 = vunpack.c.h.bf16 %v390
        %v868 = vunpack.c.l.bf16 %v391
        %v869 = vunpack.c.h.bf16 %v391
        %v870 = vunpack.c.l.bf16 %v392
        %v871 = vunpack.c.h.bf16 %v392
        %v872 = vunpack.c.l.bf16 %v393
        %v873 = vunpack.c.h.bf16 %v393
        %v874 = vunpack.c.l.bf16 %v394
        %v875 = vunpack.c.h.bf16 %v394
        %v876 = vunpack.c.l.bf16 %v395
        %v877 = vunpack.c.h.bf16 %v395
        %v878 = vunpack.c.l.bf16 %v396
        %v879 = vunpack.c.h.bf16 %v396
        %v880 = vunpack.c.l.bf16 %v397
        %v881 = vunpack.c.h.bf16 %v397
        %v882 = vunpack.c.l.bf16 %v398
        %v883 = vunpack.c.h.bf16 %v398
        %v884 = vunpack.c.l.bf16 %v399
        %v885 = vunpack.c.h.bf16 %v399
        %v886 = vunpack.c.l.bf16 %v400
        %v887 = vunpack.c.h.bf16 %v400
        %v888 = vunpack.c.l.bf16 %v401
        %v889 = vunpack.c.h.bf16 %v401
        %v890 = vunpack.c.l.bf16 %v402
        %v891 = vunpack.c.h.bf16 %v402
        %v892 = vunpack.c.l.bf16 %v403
        %v893 = vunpack.c.h.bf16 %v403
        %v894 = vunpack.c.l.bf16 %v404
        %v895 = vunpack.c.h.bf16 %v404
        %v896 = vunpack.c.l.bf16 %v405
        %v897 = vunpack.c.h.bf16 %v405
        %v898 = vunpack.c.l.bf16 %v406
        %v899 = vunpack.c.h.bf16 %v406
        %v900 = vunpack.c.l.bf16 %v407
        %v901 = vunpack.c.h.bf16 %v407
        %v902 = vunpack.c.l.bf16 %v408
        %v903 = vunpack.c.h.bf16 %v408
        %v904 = vunpack.c.l.bf16 %v409
        %v905 = vunpack.c.h.bf16 %v409
        %v906 = vunpack.c.l.bf16 %v410
        %v907 = vunpack.c.h.bf16 %v410
        %v908 = vunpack.c.l.bf16 %v411
        %v909 = vunpack.c.h.bf16 %v411
        %v910 = vunpack.c.l.bf16 %v412
        %v911 = vunpack.c.h.bf16 %v412
        %v912 = vunpack.c.l.bf16 %v413
        %v913 = vunpack.c.h.bf16 %v413
        %v914 = vunpack.c.l.bf16 %v414
        %v915 = vunpack.c.h.bf16 %v414
        %v916 = vunpack.c.l.bf16 %v415
        %v917 = vunpack.c.h.bf16 %v415
        %v918 = vunpack.c.l.bf16 %v416
        %v919 = vunpack.c.h.bf16 %v416
        %v920 = vunpack.c.l.bf16 %v417
        %v921 = vunpack.c.h.bf16 %v417
        %v922 = vunpack.c.l.bf16 %v418
        %v923 = vunpack.c.h.bf16 %v418
        %v924 = vunpack.c.l.bf16 %v419
        %v925 = vunpack.c.h.bf16 %v419
        %v926 = vunpack.c.l.bf16 %v420
        %v927 = vunpack.c.h.bf16 %v420
        %v928 = vunpack.c.l.bf16 %v421
        %v929 = vunpack.c.h.bf16 %v421
        %v930 = vunpack.c.l.bf16 %v422
        %v931 = vunpack.c.h.bf16 %v422
        %v932 = vunpack.c.l.bf16 %v423
        %v933 = vunpack.c.h.bf16 %v423
        %v934 = vunpack.c.l.bf16 %v424
        %v935 = vunpack.c.h.bf16 %v424
        %v936 = vunpack.c.l.bf16 %v425
        %v937 = vunpack.c.h.bf16 %v425
        %v938 = vunpack.c.l.bf16 %v426
        %v939 = vunpack.c.h.bf16 %v426
        %v940 = vunpack.c.l.bf16 %v427
        %v941 = vunpack.c.h.bf16 %v427
        %v942 = vunpack.c.l.bf16 %v428
        %v943 = vunpack.c.h.bf16 %v428
        %v944 = vunpack.c.l.bf16 %v429
        %v945 = vunpack.c.h.bf16 %v429
        %v946 = vunpack.c.l.bf16 %v430
        %v947 = vunpack.c.h.bf16 %v430
        %v948 = vunpack.c.l.bf16 %v431
        %v949 = vunpack.c.h.bf16 %v431
        %v950 = vunpack.c.l.bf16 %v432
        %v951 = vunpack.c.h.bf16 %v432
        %v952 = vunpack.c.l.bf16 %v433
        %v953 = vunpack.c.h.bf16 %v433
        %v954 = vunpack.c.l.bf16 %v434
        %v955 = vunpack.c.h.bf16 %v434
        %v956 = vunpack.c.l.bf16 %v435
        %v957 = vunpack.c.h.bf16 %v435
        %v958 = vunpack.c.l.bf16 %v436
        %v959 = vunpack.c.h.bf16 %v436
        %v960 = vunpack.c.l.bf16 %v437
        %v961 = vunpack.c.h.bf16 %v437
        %v962 = vunpack.c.l.bf16 %v438
        %v963 = vunpack.c.h.bf16 %v438
        %v964 = vunpack.c.l.bf16 %v439
        %v965 = vunpack.c.h.bf16 %v439
        %v966 = vunpack.c.l.bf16 %v440
        %v967 = vunpack.c.h.bf16 %v440
        %v968 = vunpack.c.l.bf16 %v441
        %v969 = vunpack.c.h.bf16 %v441
        %v970 = vunpack.c.l.bf16 %v442
        %v971 = vunpack.c.h.bf16 %v442
        %v972 = vunpack.c.l.bf16 %v443
        %v973 = vunpack.c.h.bf16 %v443
        %v974 = vunpack.c.l.bf16 %v444
        %v975 = vunpack.c.h.bf16 %v444
        %v976 = vunpack.c.l.bf16 %v445
        %v977 = vunpack.c.h.bf16 %v445
        %v978 = vunpack.c.l.bf16 %v446
        %v979 = vunpack.c.h.bf16 %v446
        %v980 = vunpack.c.l.bf16 %v447
        %v981 = vunpack.c.h.bf16 %v447
        %v982 = vunpack.c.l.bf16 %v448
        %v983 = vunpack.c.h.bf16 %v448
        %v984 = vunpack.c.l.bf16 %v449
        %v985 = vunpack.c.h.bf16 %v449
        %v986 = vunpack.c.l.bf16 %v450
        %v987 = vunpack.c.h.bf16 %v450
        %v988 = vunpack.c.l.bf16 %v451
        %v989 = vunpack.c.h.bf16 %v451
        %v990 = vunpack.c.l.bf16 %v452
        %v991 = vunpack.c.h.bf16 %v452
        %v992 = vunpack.c.l.bf16 %v453
        %v993 = vunpack.c.h.bf16 %v453
        %v994 = vunpack.c.l.bf16 %v454
        %v995 = vunpack.c.h.bf16 %v454
        %v996 = vunpack.c.l.bf16 %v455
        %v997 = vunpack.c.h.bf16 %v455
        %v998 = vunpack.c.l.bf16 %v456
        %v999 = vunpack.c.h.bf16 %v456
        %v1000 = vunpack.c.l.bf16 %v457
        %v1001 = vunpack.c.h.bf16 %v457
        %v1002 = vunpack.c.l.bf16 %v458
        %v1003 = vunpack.c.h.bf16 %v458
        %v1004 = vunpack.c.l.bf16 %v459
        %v1005 = vunpack.c.h.bf16 %v459
        %v1006 = vunpack.c.l.bf16 %v460
        %v1007 = vunpack.c.h.bf16 %v460
        %v1008 = vunpack.c.l.bf16 %v461
        %v1009 = vunpack.c.h.bf16 %v461
        %v1010 = vunpack.c.l.bf16 %v462
        %v1011 = vunpack.c.h.bf16 %v462
        %v1012 = vunpack.c.l.bf16 %v463
        %v1013 = vunpack.c.h.bf16 %v463
        %v1014 = vunpack.c.l.bf16 %v464
        %v1015 = vunpack.c.h.bf16 %v464
        %v1016 = vunpack.c.l.bf16 %v465
        %v1017 = vunpack.c.h.bf16 %v465
        %v1018 = vunpack.c.l.bf16 %v466
        %v1019 = vunpack.c.h.bf16 %v466
        %v1020 = vunpack.c.l.bf16 %v467
        %v1021 = vunpack.c.h.bf16 %v467
        %v1022 = vunpack.c.l.bf16 %v468
        %v1023 = vunpack.c.h.bf16 %v468
        %v1024 = vunpack.c.l.bf16 %v469
        %v1025 = vunpack.c.h.bf16 %v469
        %v1026 = vunpack.c.l.bf16 %v470
        %v1027 = vunpack.c.h.bf16 %v470
        %v1028 = vunpack.c.l.bf16 %v471
        %v1029 = vunpack.c.h.bf16 %v471
        %v1030 = vunpack.c.l.bf16 %v472
        %v1031 = vunpack.c.h.bf16 %v472
        %v1032 = vunpack.c.l.bf16 %v473
        %v1033 = vunpack.c.h.bf16 %v473
        %v1034 = vunpack.c.l.bf16 %v474
        %v1035 = vunpack.c.h.bf16 %v474
        %v1036 = vunpack.c.l.bf16 %v475
        %v1037 = vunpack.c.h.bf16 %v475
        %v1038 = vunpack.c.l.bf16 %v476
        %v1039 = vunpack.c.h.bf16 %v476
        %v1040 = vunpack.c.l.bf16 %v477
        %v1041 = vunpack.c.h.bf16 %v477
        %v1042 = vunpack.c.l.bf16 %v478
        %v1043 = vunpack.c.h.bf16 %v478
        %v1044 = vunpack.c.l.bf16 %v479
        %v1045 = vunpack.c.h.bf16 %v479
        %v1046 = vunpack.c.l.bf16 %v480
        %v1047 = vunpack.c.h.bf16 %v480
        %v1048 = vunpack.c.l.bf16 %v481
        %v1049 = vunpack.c.h.bf16 %v481
        %v1050 = vunpack.c.l.bf16 %v482
        %v1051 = vunpack.c.h.bf16 %v482
        %v1052 = vunpack.c.l.bf16 %v483
        %v1053 = vunpack.c.h.bf16 %v483
        %v1054 = vunpack.c.l.bf16 %v484
        %v1055 = vunpack.c.h.bf16 %v484
        %v1056 = vunpack.c.l.bf16 %v485
        %v1057 = vunpack.c.h.bf16 %v485
        %v1058 = vunpack.c.l.bf16 %v486
        %v1059 = vunpack.c.h.bf16 %v486
        %v1060 = vunpack.c.l.bf16 %v487
        %v1061 = vunpack.c.h.bf16 %v487
        %v1062 = vunpack.c.l.bf16 %v488
        %v1063 = vunpack.c.h.bf16 %v488
        %v1064 = vunpack.c.l.bf16 %v489
        %v1065 = vunpack.c.h.bf16 %v489
        %v1066 = vunpack.c.l.bf16 %v490
        %v1067 = vunpack.c.h.bf16 %v490
        %v1068 = vunpack.c.l.bf16 %v491
        %v1069 = vunpack.c.h.bf16 %v491
        %v1070 = vunpack.c.l.bf16 %v492
        %v1071 = vunpack.c.h.bf16 %v492
        %v1072 = vunpack.c.l.bf16 %v493
        %v1073 = vunpack.c.h.bf16 %v493
        %v1074 = vunpack.c.l.bf16 %v494
        %v1075 = vunpack.c.h.bf16 %v494
        %v1076 = vunpack.c.l.bf16 %v495
        %v1077 = vunpack.c.h.bf16 %v495
        %v1078 = vunpack.c.l.bf16 %v496
        %v1079 = vunpack.c.h.bf16 %v496
        %v1080 = vunpack.c.l.bf16 %v497
        %v1081 = vunpack.c.h.bf16 %v497
        %v1082 = vunpack.c.l.bf16 %v498
        %v1083 = vunpack.c.h.bf16 %v498
        %v1084 = vunpack.c.l.bf16 %v499
        %v1085 = vunpack.c.h.bf16 %v499
        %v1086 = vunpack.c.l.bf16 %v500
        %v1087 = vunpack.c.h.bf16 %v500
        %v1088 = vunpack.c.l.bf16 %v501
        %v1089 = vunpack.c.h.bf16 %v501
        %v1090 = vunpack.c.l.bf16 %v502
        %v1091 = vunpack.c.h.bf16 %v502
        %v1092 = vunpack.c.l.bf16 %v503
        %v1093 = vunpack.c.h.bf16 %v503
        %v1094 = vunpack.c.l.bf16 %v504
        %v1095 = vunpack.c.h.bf16 %v504
        %v1096 = vunpack.c.l.bf16 %v505
        %v1097 = vunpack.c.h.bf16 %v505
        %v1098 = vunpack.c.l.bf16 %v506
        %v1099 = vunpack.c.h.bf16 %v506
        %v1100 = vunpack.c.l.bf16 %v507
        %v1101 = vunpack.c.h.bf16 %v507
        %v1102 = vunpack.c.l.bf16 %v508
        %v1103 = vunpack.c.h.bf16 %v508
        %v1104 = vunpack.c.l.bf16 %v509
        %v1105 = vunpack.c.h.bf16 %v509
        %v1106 = vunpack.c.l.bf16 %v510
        %v1107 = vunpack.c.h.bf16 %v510
        %v1108 = vunpack.c.l.bf16 %v511
        %v1109 = vunpack.c.h.bf16 %v511
        %v1110 = vunpack.c.l.bf16 %v512
        %v1111 = vunpack.c.h.bf16 %v512
        %v1112 = vunpack.c.l.bf16 %v513
        %v1113 = vunpack.c.h.bf16 %v513
        %v1114 = vunpack.c.l.bf16 %v514
        %v1115 = vunpack.c.h.bf16 %v514
        %v1116 = vunpack.c.l.bf16 %v515
        %v1117 = vunpack.c.h.bf16 %v515
        %v1118 = vunpack.c.l.bf16 %v516
        %v1119 = vunpack.c.h.bf16 %v516
        %v1120 = vunpack.c.l.bf16 %v517
        %v1121 = vunpack.c.h.bf16 %v517
        %v1122 = vunpack.c.l.bf16 %v518
        %v1123 = vunpack.c.h.bf16 %v518
        %v1124 = vunpack.c.l.bf16 %v519
        %v1125 = vunpack.c.h.bf16 %v519
        %v1126 = vunpack.c.l.bf16 %v520
        %v1127 = vunpack.c.h.bf16 %v520
        %v1128 = vunpack.c.l.bf16 %v521
        %v1129 = vunpack.c.h.bf16 %v521
        %v1130 = vunpack.c.l.bf16 %v522
        %v1131 = vunpack.c.h.bf16 %v522
        %v1132 = vunpack.c.l.bf16 %v523
        %v1133 = vunpack.c.h.bf16 %v523
        %v1134 = vunpack.c.l.bf16 %v524
        %v1135 = vunpack.c.h.bf16 %v524
        %v1136 = vunpack.c.l.bf16 %v525
        %v1137 = vunpack.c.h.bf16 %v525
        %v1138 = vunpack.c.l.bf16 %v526
        %v1139 = vunpack.c.h.bf16 %v526
        %v1140 = vunpack.c.l.bf16 %v527
        %v1141 = vunpack.c.h.bf16 %v527
        %v1142 = vunpack.c.l.bf16 %v528
        %v1143 = vunpack.c.h.bf16 %v528
        %v1144 = vunpack.c.l.bf16 %v529
        %v1145 = vunpack.c.h.bf16 %v529
        %v1146 = vunpack.c.l.bf16 %v530
        %v1147 = vunpack.c.h.bf16 %v530
        %v1148 = vunpack.c.l.bf16 %v531
        %v1149 = vunpack.c.h.bf16 %v531
        %v1150 = vunpack.c.l.bf16 %v532
        %v1151 = vunpack.c.h.bf16 %v532
        %v1152 = vunpack.c.l.bf16 %v533
        %v1153 = vunpack.c.h.bf16 %v533
        %v1154 = vunpack.c.l.bf16 %v534
        %v1155 = vunpack.c.h.bf16 %v534
        %v1156 = vunpack.c.l.bf16 %v535
        %v1157 = vunpack.c.h.bf16 %v535
        %v1158 = vunpack.c.l.bf16 %v536
        %v1159 = vunpack.c.h.bf16 %v536
        %v1160 = vunpack.c.l.bf16 %v537
        %v1161 = vunpack.c.h.bf16 %v537
        %v1162 = vunpack.c.l.bf16 %v538
        %v1163 = vunpack.c.h.bf16 %v538
        %v1164 = vunpack.c.l.bf16 %v539
        %v1165 = vunpack.c.h.bf16 %v539
        %v1166 = vunpack.c.l.bf16 %v540
        %v1167 = vunpack.c.h.bf16 %v540
        %v1168 = vunpack.c.l.bf16 %v541
        %v1169 = vunpack.c.h.bf16 %v541
        %v1170 = vunpack.c.l.bf16 %v542
        %v1171 = vunpack.c.h.bf16 %v542
        %v1172 = vunpack.c.l.bf16 %v543
        %v1173 = vunpack.c.h.bf16 %v543
        %v1174 = vunpack.c.l.bf16 %v544
        %v1175 = vunpack.c.h.bf16 %v544
        %v1176 = vunpack.c.l.bf16 %v545
        %v1177 = vunpack.c.h.bf16 %v545
        %v1178 = vunpack.c.l.bf16 %v546
        %v1179 = vunpack.c.h.bf16 %v546
        %v1180 = vunpack.c.l.bf16 %v547
        %v1181 = vunpack.c.h.bf16 %v547
        %v1182 = vunpack.c.l.bf16 %v548
        %v1183 = vunpack.c.h.bf16 %v548
        %v1184 = vunpack.c.l.bf16 %v549
        %v1185 = vunpack.c.h.bf16 %v549
        %v1186 = vunpack.c.l.bf16 %v550
        %v1187 = vunpack.c.h.bf16 %v550
        %v1188 = vunpack.c.l.bf16 %v551
        %v1189 = vunpack.c.h.bf16 %v551
        %v1190 = vunpack.c.l.bf16 %v552
        %v1191 = vunpack.c.h.bf16 %v552
        %v1192 = vunpack.c.l.bf16 %v553
        %v1193 = vunpack.c.h.bf16 %v553
        %v1194 = vunpack.c.l.bf16 %v554
        %v1195 = vunpack.c.h.bf16 %v554
        %v1196 = vunpack.c.l.bf16 %v555
        %v1197 = vunpack.c.h.bf16 %v555
        %v1198 = vunpack.c.l.bf16 %v556
        %v1199 = vunpack.c.h.bf16 %v556
        %v1200 = vunpack.c.l.bf16 %v557
        %v1201 = vunpack.c.h.bf16 %v557
        %v1202 = vunpack.c.l.bf16 %v558
        %v1203 = vunpack.c.h.bf16 %v558
        %v1204 = vunpack.c.l.bf16 %v559
        %v1205 = vunpack.c.h.bf16 %v559
        %v1206 = vunpack.c.l.bf16 %v560
        %v1207 = vunpack.c.h.bf16 %v560
        %v1208 = vunpack.c.l.bf16 %v561
        %v1209 = vunpack.c.h.bf16 %v561
        %v1210 = vunpack.c.l.bf16 %v562
        %v1211 = vunpack.c.h.bf16 %v562
        %v1212 = vunpack.c.l.bf16 %v563
        %v1213 = vunpack.c.h.bf16 %v563
        %v1214 = vunpack.c.l.bf16 %v564
        %v1215 = vunpack.c.h.bf16 %v564
        %v1216 = vunpack.c.l.bf16 %v565
        %v1217 = vunpack.c.h.bf16 %v565
        %v1218 = vunpack.c.l.bf16 %v566
        %v1219 = vunpack.c.h.bf16 %v566
        %v1220 = vunpack.c.l.bf16 %v567
        %v1221 = vunpack.c.h.bf16 %v567
        %v1222 = vunpack.c.l.bf16 %v568
        %v1223 = vunpack.c.h.bf16 %v568
        %v1224 = vunpack.c.l.bf16 %v569
        %v1225 = vunpack.c.h.bf16 %v569
        %v1226 = vunpack.c.l.bf16 %v570
        %v1227 = vunpack.c.h.bf16 %v570
        %v1228 = vunpack.c.l.bf16 %v571
        %v1229 = vunpack.c.h.bf16 %v571
        %v1230 = vunpack.c.l.bf16 %v572
        %v1231 = vunpack.c.h.bf16 %v572
        %v1232 = vunpack.c.l.bf16 %v573
        %v1233 = vunpack.c.h.bf16 %v573
        %v1234 = vunpack.c.l.bf16 %v574
        %v1235 = vunpack.c.h.bf16 %v574
        %v1236 = vunpack.c.l.bf16 %v575
        %v1237 = vunpack.c.h.bf16 %v575
        %v1238 = vunpack.c.l.bf16 %v576
        %v1239 = vunpack.c.h.bf16 %v576
        %v1240 = vunpack.c.l.bf16 %v577
        %v1241 = vunpack.c.h.bf16 %v577
        %v1242 = vunpack.c.l.bf16 %v578
        %v1243 = vunpack.c.h.bf16 %v578
        %v1244 = vunpack.c.l.bf16 %v579
        %v1245 = vunpack.c.h.bf16 %v579
        %v1246 = vunpack.c.l.bf16 %v580
        %v1247 = vunpack.c.h.bf16 %v580
        %v1248 = vunpack.c.l.bf16 %v581
        %v1249 = vunpack.c.h.bf16 %v581
        %v1250 = vunpack.c.l.bf16 %v582
        %v1251 = vunpack.c.h.bf16 %v582
        %v1252 = vunpack.c.l.bf16 %v583
        %v1253 = vunpack.c.h.bf16 %v583
        %v1254 = vunpack.c.l.bf16 %v584
        %v1255 = vunpack.c.h.bf16 %v584
        %v1256 = vunpack.c.l.bf16 %v585
        %v1257 = vunpack.c.h.bf16 %v585
        %v1258 = vunpack.c.l.bf16 %v586
        %v1259 = vunpack.c.h.bf16 %v586
        %v1260 = vunpack.c.l.bf16 %v587
        %v1261 = vunpack.c.h.bf16 %v587
        %v1262 = vunpack.c.l.bf16 %v588
        %v1263 = vunpack.c.h.bf16 %v588
        %v1264 = vunpack.c.l.bf16 %v589
        %v1265 = vunpack.c.h.bf16 %v589
        %v1266 = vunpack.c.l.bf16 %v590
        %v1267 = vunpack.c.h.bf16 %v590
        %v1268 = vunpack.c.l.bf16 %v591
        %v1269 = vunpack.c.h.bf16 %v591
        %v1270 = vunpack.c.l.bf16 %v592
        %v1271 = vunpack.c.h.bf16 %v592
        %v1272 = vunpack.c.l.bf16 %v593
        %v1273 = vunpack.c.h.bf16 %v593
        %v1274 = vunpack.c.l.bf16 %v594
        %v1275 = vunpack.c.h.bf16 %v594
        %v1276 = vunpack.c.l.bf16 %v595
        %v1277 = vunpack.c.h.bf16 %v595
        %v1278 = vunpack.c.l.bf16 %v596
        %v1279 = vunpack.c.h.bf16 %v596
        %v1280 = vunpack.c.l.bf16 %v597
        %v1281 = vunpack.c.h.bf16 %v597
        %v1282 = vunpack.c.l.bf16 %v598
        %v1283 = vunpack.c.h.bf16 %v598
        %v1284 = vunpack.c.l.bf16 %v599
        %v1285 = vunpack.c.h.bf16 %v599
        %v1286 = vunpack.c.l.bf16 %v600
        %v1287 = vunpack.c.h.bf16 %v600
        %v1288 = vunpack.c.l.bf16 %v601
        %v1289 = vunpack.c.h.bf16 %v601
        %v1290 = vunpack.c.l.bf16 %v602
        %v1291 = vunpack.c.h.bf16 %v602
        %v1292 = vunpack.c.l.bf16 %v603
        %v1293 = vunpack.c.h.bf16 %v603
        %v1294 = vunpack.c.l.bf16 %v604
        %v1295 = vunpack.c.h.bf16 %v604
        %v1296 = vunpack.c.l.bf16 %v605
        %v1297 = vunpack.c.h.bf16 %v605
        %v1298 = vunpack.c.l.bf16 %v606
        %v1299 = vunpack.c.h.bf16 %v606
        %v1300 = vunpack.c.l.bf16 %v607
        %v1301 = vunpack.c.h.bf16 %v607
        %v1302 = vunpack.c.l.bf16 %v608
        %v1303 = vunpack.c.h.bf16 %v608
        %v1304 = vunpack.c.l.bf16 %v609
        %v1305 = vunpack.c.h.bf16 %v609
        %v1306 = vunpack.c.l.bf16 %v610
        %v1307 = vunpack.c.h.bf16 %v610
        %v1308 = vunpack.c.l.bf16 %v611
        %v1309 = vunpack.c.h.bf16 %v611
        %v1310 = vunpack.c.l.bf16 %v612
        %v1311 = vunpack.c.h.bf16 %v612
        %v1312 = vunpack.c.l.bf16 %v613
        %v1313 = vunpack.c.h.bf16 %v613
        %v1314 = vunpack.c.l.bf16 %v614
        %v1315 = vunpack.c.h.bf16 %v614
        %v1316 = vunpack.c.l.bf16 %v615
        %v1317 = vunpack.c.h.bf16 %v615
        %v1318 = vunpack.c.l.bf16 %v616
        %v1319 = vunpack.c.h.bf16 %v616
        %v1320 = vunpack.c.l.bf16 %v617
        %v1321 = vunpack.c.h.bf16 %v617
        %v1322 = vunpack.c.l.bf16 %v618
        %v1323 = vunpack.c.h.bf16 %v618
        %v1324 = vunpack.c.l.bf16 %v619
        %v1325 = vunpack.c.h.bf16 %v619
        %v1326 = vunpack.c.l.bf16 %v620
        %v1327 = vunpack.c.h.bf16 %v620
        %v1328 = vunpack.c.l.bf16 %v621
        %v1329 = vunpack.c.h.bf16 %v621
        %v1330 = vunpack.c.l.bf16 %v622
        %v1331 = vunpack.c.h.bf16 %v622
        %v1332 = vunpack.c.l.bf16 %v623
        %v1333 = vunpack.c.h.bf16 %v623
        %v1334 = vunpack.c.l.bf16 %v624
        %v1335 = vunpack.c.h.bf16 %v624
        %v1336 = vunpack.c.l.bf16 %v625
        %v1337 = vunpack.c.h.bf16 %v625
        %v1338 = vunpack.c.l.bf16 %v626
        %v1339 = vunpack.c.h.bf16 %v626
        %v1340 = vunpack.c.l.bf16 %v627
        %v1341 = vunpack.c.h.bf16 %v627
        %v1342 = vunpack.c.l.bf16 %v628
        %v1343 = vunpack.c.h.bf16 %v628
        %v1344 = vunpack.c.l.bf16 %v629
        %v1345 = vunpack.c.h.bf16 %v629
        %v1346 = vunpack.c.l.bf16 %v630
        %v1347 = vunpack.c.h.bf16 %v630
        %v1348 = vunpack.c.l.bf16 %v631
        %v1349 = vunpack.c.h.bf16 %v631
        %v1350 = vunpack.c.l.bf16 %v632
        %v1351 = vunpack.c.h.bf16 %v632
        %v1352 = vunpack.c.l.bf16 %v633
        %v1353 = vunpack.c.h.bf16 %v633
        %v1354 = vunpack.c.l.bf16 %v634
        %v1355 = vunpack.c.h.bf16 %v634
        %v1356 = vunpack.c.l.bf16 %v635
        %v1357 = vunpack.c.h.bf16 %v635
        %v1358 = vunpack.c.l.bf16 %v636
        %v1359 = vunpack.c.h.bf16 %v636
        %v1360 = vunpack.c.l.bf16 %v637
        %v1361 = vunpack.c.h.bf16 %v637
        %v1362 = vunpack.c.l.bf16 %v638
        %v1363 = vunpack.c.h.bf16 %v638
        %v1364 = vunpack.c.l.bf16 %v639
        %v1365 = vunpack.c.h.bf16 %v639
        %v1366 = vunpack.c.l.bf16 %v640
        %v1367 = vunpack.c.h.bf16 %v640
        %v1368 = vunpack.c.l.bf16 %v641
        %v1369 = vunpack.c.h.bf16 %v641
        %v1370 = vunpack.c.l.bf16 %v642
        %v1371 = vunpack.c.h.bf16 %v642
        %v1372 = vunpack.c.l.bf16 %v643
        %v1373 = vunpack.c.h.bf16 %v643
        %v1374 = vunpack.c.l.bf16 %v644
        %v1375 = vunpack.c.h.bf16 %v644
        %v1376 = vunpack.c.l.bf16 %v645
        %v1377 = vunpack.c.h.bf16 %v645
        %v1378 = vunpack.c.l.bf16 %v646
        %v1379 = vunpack.c.h.bf16 %v646
        %v1380 = vunpack.c.l.bf16 %v647
        %v1381 = vunpack.c.h.bf16 %v647
        %v1382 = vunpack.c.l.bf16 %v648
        %v1383 = vunpack.c.h.bf16 %v648
        %v1384 = vunpack.c.l.bf16 %v649
        %v1385 = vunpack.c.h.bf16 %v649
        %v1386 = vunpack.c.l.bf16 %v650
        %v1387 = vunpack.c.h.bf16 %v650
        %v1388 = vunpack.c.l.bf16 %v651
        %v1389 = vunpack.c.h.bf16 %v651
        %v1390 = vunpack.c.l.bf16 %v652
        %v1391 = vunpack.c.h.bf16 %v652
        %v1392 = vunpack.c.l.bf16 %v653
        %v1393 = vunpack.c.h.bf16 %v653
        %v1394 = vunpack.c.l.bf16 %v654
        %v1395 = vunpack.c.h.bf16 %v654
        %v1396 = vunpack.c.l.bf16 %v655
        %v1397 = vunpack.c.h.bf16 %v655
        %v1398 = vunpack.c.l.bf16 %v656
        %v1399 = vunpack.c.h.bf16 %v656
        %v1400 = vunpack.c.l.bf16 %v657
        %v1401 = vunpack.c.h.bf16 %v657
        %v1402 = vunpack.c.l.bf16 %v658
        %v1403 = vunpack.c.h.bf16 %v658
        %v1404 = vunpack.c.l.bf16 %v659
        %v1405 = vunpack.c.h.bf16 %v659
        %v1406 = vunpack.c.l.bf16 %v660
        %v1407 = vunpack.c.h.bf16 %v660
        %v1408 = vunpack.c.l.bf16 %v661
        %v1409 = vunpack.c.h.bf16 %v661
        %v1410 = vunpack.c.l.bf16 %v662
        %v1411 = vunpack.c.h.bf16 %v662
        %v1412 = vunpack.c.l.bf16 %v663
        %v1413 = vunpack.c.h.bf16 %v663
        %v1414 = vunpack.c.l.bf16 %v664
        %v1415 = vunpack.c.h.bf16 %v664
        %v1416 = vunpack.c.l.bf16 %v665
        %v1417 = vunpack.c.h.bf16 %v665
        %v1418 = vunpack.c.l.bf16 %v666
        %v1419 = vunpack.c.h.bf16 %v666
        %v1420 = vunpack.c.l.bf16 %v667
        %v1421 = vunpack.c.h.bf16 %v667
        %v1422 = vunpack.c.l.bf16 %v668
        %v1423 = vunpack.c.h.bf16 %v668
        %v1424 = vunpack.c.l.bf16 %v669
        %v1425 = vunpack.c.h.bf16 %v669
        %v1426 = vunpack.c.l.bf16 %v670
        %v1427 = vunpack.c.h.bf16 %v670
        %v1428 = vunpack.c.l.bf16 %v671
        %v1429 = vunpack.c.h.bf16 %v671
        %v1430 = vunpack.c.l.bf16 %v672
        %v1431 = vunpack.c.h.bf16 %v672
        %v1432 = vunpack.c.l.bf16 %v673
        %v1433 = vunpack.c.h.bf16 %v673
        %v1434 = vunpack.c.l.bf16 %v674
        %v1435 = vunpack.c.h.bf16 %v674
        %v1436 = vunpack.c.l.bf16 %v675
        %v1437 = vunpack.c.h.bf16 %v675
        %v1438 = vunpack.c.l.bf16 %v676
        %v1439 = vunpack.c.h.bf16 %v676
        %v1440 = vunpack.c.l.bf16 %v677
        %v1441 = vunpack.c.h.bf16 %v677
        %v1442 = vunpack.c.l.bf16 %v678
        %v1443 = vunpack.c.h.bf16 %v678
        %v1444 = vunpack.c.l.bf16 %v679
        %v1445 = vunpack.c.h.bf16 %v679
        %v1446 = vunpack.c.l.bf16 %v680
        %v1447 = vunpack.c.h.bf16 %v680
        %v1448 = vunpack.c.l.bf16 %v681
        %v1449 = vunpack.c.h.bf16 %v681
        %v1450 = vunpack.c.l.bf16 %v682
        %v1451 = vunpack.c.h.bf16 %v682
        %v1452 = vunpack.c.l.bf16 %v683
        %v1453 = vunpack.c.h.bf16 %v683
        %v1454 = vunpack.c.l.bf16 %v684
        %v1455 = vunpack.c.h.bf16 %v684
        %v1456 = vunpack.c.l.bf16 %v685
        %v1457 = vunpack.c.h.bf16 %v685
        %v1458 = vunpack.c.l.bf16 %v686
        %v1459 = vunpack.c.h.bf16 %v686
        %v1460 = vunpack.c.l.bf16 %v687
        %v1461 = vunpack.c.h.bf16 %v687
        %v1462 = vunpack.c.l.bf16 %v688
        %v1463 = vunpack.c.h.bf16 %v688
        %v1464 = vunpack.c.l.bf16 %v689
        %v1465 = vunpack.c.h.bf16 %v689
        %v1466 = vunpack.c.l.bf16 %v690
        %v1467 = vunpack.c.h.bf16 %v690
        %v1468 = vunpack.c.l.bf16 %v691
        %v1469 = vunpack.c.h.bf16 %v691
        %v1470 = vunpack.c.l.bf16 %v692
        %v1471 = vunpack.c.h.bf16 %v692
        %v1472 = vunpack.c.l.bf16 %v693
        %v1473 = vunpack.c.h.bf16 %v693
        %v1474 = vunpack.c.l.bf16 %v694
        %v1475 = vunpack.c.h.bf16 %v694
        %v1476 = vunpack.c.l.bf16 %v695
        %v1477 = vunpack.c.h.bf16 %v695
        %v1478 = vunpack.c.l.bf16 %v696
        %v1479 = vunpack.c.h.bf16 %v696
        %v1480 = vunpack.c.l.bf16 %v697
        %v1481 = vunpack.c.h.bf16 %v697
        %v1482 = vld [vmem:[#allocation2] sm:$0xff]
        %v1483 = vld [vmem:[#allocation2 + $0x8] sm:$0xff]
        %v1484 = vld [vmem:[#allocation2 + $0x10] sm:$0xff]
        %v1485 = vld [vmem:[#allocation2 + $0x18] sm:$0xff]
        %v1486 = vld [vmem:[#allocation2 + $0x20] sm:$0xff]
        %v1487 = vld [vmem:[#allocation2 + $0x28] sm:$0xff]
        %v1488 = vld [vmem:[#allocation2 + $0x30] sm:$0xff]
        %vm1489 = vcmask 130048
        %v1491 = vsel %vm1489, %v1488, 0
        %1493 = vmatprep.subr.mxu0 %v699
        %1494 = vmatpush1.msra.mxu0 %v698
        %1495 = vmatprep.subr.mxu0 %v707
        %1496 = vmatpush1.msra.mxu0 %v706
        %1497 = vmatprep.subr.mxu0 %v715
        %1498 = vmatpush1.msra.mxu0 %v714
        %1499 = vmatprep.subr.mxu0 %v723
        %1500 = vmatpush1.msra.mxu0 %v722
        %1501 = vmatprep.subr.mxu0 %v731
        %1502 = vmatpush1.msra.mxu0 %v730
        %1503 = vmatprep.subr.mxu0 %v739
        %1504 = vmatpush1.msra.mxu0 %v738
        %1505 = vmatprep.subr.mxu0 %v747
        %1506 = vmatpush1.msra.mxu0 %v746
        %1507 = vmatprep.subr.mxu0 %v755
        %1508 = vmatpush1.msra.mxu0 %v754
        %1509 = vmatprep.subr.mxu0 %v763
        %1510 = vmatpush1.msra.mxu0 %v762
        %1511 = vmatprep.subr.mxu0 %v771
        %1512 = vmatpush1.msra.mxu0 %v770
        %1513 = vmatprep.subr.mxu0 %v779
        %1514 = vmatpush1.msra.mxu0 %v778
        %1515 = vmatprep.subr.mxu0 %v787
        %1516 = vmatpush1.msra.mxu0 %v786
        %1517 = vmatprep.subr.mxu0 %v795
        %1518 = vmatpush1.msra.mxu0 %v794
        %1519 = vmatprep.subr.mxu0 %v803
        %1520 = vmatpush1.msra.mxu0 %v802
        %1521 = vmatprep.subr.mxu0 %v811
        %1522 = vmatpush1.msra.mxu0 %v810
        %1523 = vmatprep.subr.mxu0 %v819
        %1524 = vmatpush1.msra.mxu0 %v818
        %1525 = vmatprep.subr.mxu0 %v827
        %1526 = vmatpush1.msra.mxu0 %v826
        %1527 = vmatprep.subr.mxu0 %v835
        %1528 = vmatpush1.msra.mxu0 %v834
        %1529 = vmatprep.subr.mxu0 %v843
        %1530 = vmatpush1.msra.mxu0 %v842
        %1531 = vmatprep.subr.mxu0 %v851
        %1532 = vmatpush1.msra.mxu0 %v850
        %1533 = vmatprep.subr.mxu0 %v859
        %1534 = vmatpush1.msra.mxu0 %v858
        %1535 = vmatprep.subr.mxu0 %v867
        %1536 = vmatpush1.msra.mxu0 %v866
        %1537 = vmatprep.subr.mxu0 %v875
        %1538 = vmatpush1.msra.mxu0 %v874
        %1539 = vmatprep.subr.mxu0 %v883
        %1540 = vmatpush1.msra.mxu0 %v882
        %1541 = vmatprep.subr.mxu0 %v891
        %1542 = vmatpush1.msra.mxu0 %v890
        %1543 = vmatprep.subr.mxu0 %v899
        %1544 = vmatpush1.msra.mxu0 %v898
        %1545 = vmatprep.subr.mxu0 %v907
        %1546 = vmatpush1.msra.mxu0 %v906
        %1547 = vmatprep.subr.mxu0 %v915
        %1548 = vmatpush1.msra.mxu0 %v914
        %1549 = vmatprep.subr.mxu0 %v923
        %1550 = vmatpush1.msra.mxu0 %v922
        %1551 = vmatprep.subr.mxu0 %v931
        %1552 = vmatpush1.msra.mxu0 %v930
        %1553 = vmatprep.subr.mxu0 %v939
        %1554 = vmatpush1.msra.mxu0 %v938
        %1555 = vmatprep.subr.mxu0 %v947
        %1556 = vmatpush1.msra.mxu0 %v946
        %1557 = vmatprep.mubr.f32.mxu0 %v1483
        %1558 = vmatmul.mubr.f32.gmra.mrb[0].mxu0 %v1482
        %v1559 = vpop.f32.mrb[0].mxu0
        %v1560 = vadd.f32 0.0, %v1559
        %v1561 = vpop.f32.mrb[0].mxu0
        %v1562 = vadd.f32 0.0, %v1561
        %1563 = vdwg.mxu0
        %1564 = vmatprep.subr.mxu0 %v955
        %1565 = vmatpush1.msra.mxu0 %v954
        %1566 = vmatprep.subr.mxu0 %v963
        %1567 = vmatpush1.msra.mxu0 %v962
        %1568 = vmatprep.subr.mxu0 %v971
        %1569 = vmatpush1.msra.mxu0 %v970
        %1570 = vmatprep.subr.mxu0 %v979
        %1571 = vmatpush1.msra.mxu0 %v978
        %1572 = vmatprep.subr.mxu0 %v987
        %1573 = vmatpush1.msra.mxu0 %v986
        %1574 = vmatprep.subr.mxu0 %v995
        %1575 = vmatpush1.msra.mxu0 %v994
        %1576 = vmatprep.subr.mxu0 %v1003
        %1577 = vmatpush1.msra.mxu0 %v1002
        %1578 = vmatprep.subr.mxu0 %v1011
        %1579 = vmatpush1.msra.mxu0 %v1010
        %1580 = vmatprep.subr.mxu0 %v1019
        %1581 = vmatpush1.msra.mxu0 %v1018
        %1582 = vmatprep.subr.mxu0 %v1027
        %1583 = vmatpush1.msra.mxu0 %v1026
        %1584 = vmatprep.subr.mxu0 %v1035
        %1585 = vmatpush1.msra.mxu0 %v1034
        %1586 = vmatprep.subr.mxu0 %v1043
        %1587 = vmatpush1.msra.mxu0 %v1042
        %1588 = vmatprep.subr.mxu0 %v1051
        %1589 = vmatpush1.msra.mxu0 %v1050
        %1590 = vmatprep.subr.mxu0 %v1059
        %1591 = vmatpush1.msra.mxu0 %v1058
        %1592 = vmatprep.subr.mxu0 %v1067
        %1593 = vmatpush1.msra.mxu0 %v1066
        %1594 = vmatprep.subr.mxu0 %v1075
        %1595 = vmatpush1.msra.mxu0 %v1074
        %1596 = vmatprep.subr.mxu0 %v1083
        %1597 = vmatpush1.msra.mxu0 %v1082
        %1598 = vmatprep.subr.mxu0 %v1091
        %1599 = vmatpush1.msra.mxu0 %v1090
        %1600 = vmatprep.subr.mxu0 %v1099
        %1601 = vmatpush1.msra.mxu0 %v1098
        %1602 = vmatprep.subr.mxu0 %v1107
        %1603 = vmatpush1.msra.mxu0 %v1106
        %1604 = vmatprep.subr.mxu0 %v1115
        %1605 = vmatpush1.msra.mxu0 %v1114
        %1606 = vmatprep.subr.mxu0 %v1123
        %1607 = vmatpush1.msra.mxu0 %v1122
        %1608 = vmatprep.subr.mxu0 %v1131
        %1609 = vmatpush1.msra.mxu0 %v1130
        %1610 = vmatprep.subr.mxu0 %v1139
        %1611 = vmatpush1.msra.mxu0 %v1138
        %1612 = vmatprep.subr.mxu0 %v1147
        %1613 = vmatpush1.msra.mxu0 %v1146
        %1614 = vmatprep.subr.mxu0 %v1155
        %1615 = vmatpush1.msra.mxu0 %v1154
        %1616 = vmatprep.subr.mxu0 %v1163
        %1617 = vmatpush1.msra.mxu0 %v1162
        %1618 = vmatprep.subr.mxu0 %v1171
        %1619 = vmatpush1.msra.mxu0 %v1170
        %1620 = vmatprep.subr.mxu0 %v1179
        %1621 = vmatpush1.msra.mxu0 %v1178
        %1622 = vmatprep.subr.mxu0 %v1187
        %1623 = vmatpush1.msra.mxu0 %v1186
        %1624 = vmatprep.subr.mxu0 %v1195
        %1625 = vmatpush1.msra.mxu0 %v1194
        %1626 = vmatprep.subr.mxu0 %v1203
        %1627 = vmatpush1.msra.mxu0 %v1202
        %1628 = vmatprep.mubr.f32.mxu0 %v1485
        %1629 = vmatmul.mubr.f32.gmra.mrb[0].mxu0 %v1484
        %v1630 = vpop.f32.mrb[0].mxu0
        %v1631 = vadd.f32 %v1560, %v1630
        %v1632 = vpop.f32.mrb[0].mxu0
        %v1633 = vadd.f32 %v1562, %v1632
        %1634 = vdwg.mxu0
        %1635 = vmatprep.subr.mxu0 %v1211
        %1636 = vmatpush1.msra.mxu0 %v1210
        %1637 = vmatprep.subr.mxu0 %v1219
        %1638 = vmatpush1.msra.mxu0 %v1218
        %1639 = vmatprep.subr.mxu0 %v1227
        %1640 = vmatpush1.msra.mxu0 %v1226
        %1641 = vmatprep.subr.mxu0 %v1235
        %1642 = vmatpush1.msra.mxu0 %v1234
        %1643 = vmatprep.subr.mxu0 %v1243
        %1644 = vmatpush1.msra.mxu0 %v1242
        %1645 = vmatprep.subr.mxu0 %v1251
        %1646 = vmatpush1.msra.mxu0 %v1250
        %1647 = vmatprep.subr.mxu0 %v1259
        %1648 = vmatpush1.msra.mxu0 %v1258
        %1649 = vmatprep.subr.mxu0 %v1267
        %1650 = vmatpush1.msra.mxu0 %v1266
        %1651 = vmatprep.subr.mxu0 %v1275
        %1652 = vmatpush1.msra.mxu0 %v1274
        %1653 = vmatprep.subr.mxu0 %v1283
        %1654 = vmatpush1.msra.mxu0 %v1282
        %1655 = vmatprep.subr.mxu0 %v1291
        %1656 = vmatpush1.msra.mxu0 %v1290
        %1657 = vmatprep.subr.mxu0 %v1299
        %1658 = vmatpush1.msra.mxu0 %v1298
        %1659 = vmatprep.subr.mxu0 %v1307
        %1660 = vmatpush1.msra.mxu0 %v1306
        %1661 = vmatprep.subr.mxu0 %v1315
        %1662 = vmatpush1.msra.mxu0 %v1314
        %1663 = vmatprep.subr.mxu0 %v1323
        %1664 = vmatpush1.msra.mxu0 %v1322
        %1665 = vmatprep.subr.mxu0 %v1331
        %1666 = vmatpush1.msra.mxu0 %v1330
        %1667 = vmatprep.subr.mxu0 %v1339
        %1668 = vmatpush1.msra.mxu0 %v1338
        %1669 = vmatprep.subr.mxu0 %v1347
        %1670 = vmatpush1.msra.mxu0 %v1346
        %1671 = vmatprep.subr.mxu0 %v1355
        %1672 = vmatpush1.msra.mxu0 %v1354
        %1673 = vmatprep.subr.mxu0 %v1363
        %1674 = vmatpush1.msra.mxu0 %v1362
        %1675 = vmatprep.subr.mxu0 %v1371
        %1676 = vmatpush1.msra.mxu0 %v1370
        %1677 = vmatprep.subr.mxu0 %v1379
        %1678 = vmatpush1.msra.mxu0 %v1378
        %1679 = vmatprep.subr.mxu0 %v1387
        %1680 = vmatpush1.msra.mxu0 %v1386
        %1681 = vmatprep.subr.mxu0 %v1395
        %1682 = vmatpush1.msra.mxu0 %v1394
        %1683 = vmatprep.subr.mxu0 %v1403
        %1684 = vmatpush1.msra.mxu0 %v1402
        %1685 = vmatprep.subr.mxu0 %v1411
        %1686 = vmatpush1.msra.mxu0 %v1410
        %1687 = vmatprep.subr.mxu0 %v1419
        %1688 = vmatpush1.msra.mxu0 %v1418
        %1689 = vmatprep.subr.mxu0 %v1427
        %1690 = vmatpush1.msra.mxu0 %v1426
        %1691 = vmatprep.subr.mxu0 %v1435
        %1692 = vmatpush1.msra.mxu0 %v1434
        %1693 = vmatprep.subr.mxu0 %v1443
        %1694 = vmatpush1.msra.mxu0 %v1442
        %1695 = vmatprep.subr.mxu0 %v1451
        %1696 = vmatpush1.msra.mxu0 %v1450
        %1697 = vmatprep.subr.mxu0 %v1459
        %1698 = vmatpush1.msra.mxu0 %v1458
        %1699 = vmatprep.mubr.f32.mxu0 %v1487
        %1700 = vmatmul.mubr.f32.gmra.mrb[0].mxu0 %v1486
        %v1701 = vpop.f32.mrb[0].mxu0
        %v1702 = vadd.f32 %v1631, %v1701
        %v1703 = vpop.f32.mrb[0].mxu0
        %v1704 = vadd.f32 %v1633, %v1703
        %1705 = vdwg.mxu0
        %1706 = vmatprep.subr.mxu0 %v1467
        %1707 = vmatpush1.msra.mxu0 %v1466
        %1708 = vmatprep.subr.mxu0 %v1475
        %1709 = vmatpush1.msra.mxu0 %v1474
        %1710 = vmatprep.subr.mxu0 0.0
        %1711 = vmatpush1.msra.mxu0 0.0
        %1712 = vmatprep.subr.mxu0 0.0
        %1713 = vmatpush1.msra.mxu0 0.0
        %1714 = vmatprep.subr.mxu0 0.0
        %1715 = vmatpush1.msra.mxu0 0.0
        %1716 = vmatprep.subr.mxu0 0.0
        %1717 = vmatpush1.msra.mxu0 0.0
        %1718 = vmatprep.subr.mxu0 0.0
        %1719 = vmatpush1.msra.mxu0 0.0
        %1720 = vmatprep.subr.mxu0 0.0
        %1721 = vmatpush1.msra.mxu0 0.0
        %1722 = vmatprep.subr.mxu0 0.0
        %1723 = vmatpush1.msra.mxu0 0.0
        %1724 = vmatprep.subr.mxu0 0.0
        %1725 = vmatpush1.msra.mxu0 0.0
        %1726 = vmatprep.subr.mxu0 0.0
        %1727 = vmatpush1.msra.mxu0 0.0
        %1728 = vmatprep.subr.mxu0 0.0
        %1729 = vmatpush1.msra.mxu0 0.0
        %1730 = vmatprep.subr.mxu0 0.0
        %1731 = vmatpush1.msra.mxu0 0.0
        %1732 = vmatprep.subr.mxu0 0.0
        %1733 = vmatpush1.msra.mxu0 0.0
        %1734 = vmatprep.subr.mxu0 0.0
        %1735 = vmatpush1.msra.mxu0 0.0
        %1736 = vmatprep.subr.mxu0 0.0
        %1737 = vmatpush1.msra.mxu0 0.0
        %1738 = vmatprep.subr.mxu0 0.0
        %1739 = vmatpush1.msra.mxu0 0.0
        %1740 = vmatprep.subr.mxu0 0.0
        %1741 = vmatpush1.msra.mxu0 0.0
        %1742 = vmatprep.subr.mxu0 0.0
        %1743 = vmatpush1.msra.mxu0 0.0
        %1744 = vmatprep.subr.mxu0 0.0
        %1745 = vmatpush1.msra.mxu0 0.0
        %1746 = vmatprep.subr.mxu0 0.0
        %1747 = vmatpush1.msra.mxu0 0.0
        %1748 = vmatprep.subr.mxu0 0.0
        %1749 = vmatpush1.msra.mxu0 0.0
        %1750 = vmatprep.subr.mxu0 0.0
        %1751 = vmatpush1.msra.mxu0 0.0
        %1752 = vmatprep.subr.mxu0 0.0
        %1753 = vmatpush1.msra.mxu0 0.0
        %1754 = vmatprep.subr.mxu0 0.0
        %1755 = vmatpush1.msra.mxu0 0.0
        %1756 = vmatprep.subr.mxu0 0.0
        %1757 = vmatpush1.msra.mxu0 0.0
        %1758 = vmatprep.subr.mxu0 0.0
        %1759 = vmatpush1.msra.mxu0 0.0
        %1760 = vmatprep.subr.mxu0 0.0
        %1761 = vmatpush1.msra.mxu0 0.0
        %1762 = vmatprep.subr.mxu0 0.0
        %1763 = vmatpush1.msra.mxu0 0.0
        %1764 = vmatprep.subr.mxu0 0.0
        %1765 = vmatpush1.msra.mxu0 0.0
        %1766 = vmatprep.subr.mxu0 0.0
        %1767 = vmatpush1.msra.mxu0 0.0
        %1768 = vmatprep.subr.mxu0 0.0
        %1769 = vmatpush1.msra.mxu0 0.0
        %1770 = vmatprep.mubr.f32.mxu0 0.0
        %1771 = vmatmul.mubr.f32.gmra.mrb[0].mxu0 %v1491
        %v1772 = vpop.f32.mrb[0].mxu0
        %v1773 = vadd.f32 %v1702, %v1772
        %v1774 = vpop.f32.mrb[0].mxu0
        %v1775 = vadd.f32 %v1704, %v1774
        %1776 = vdwg.mxu0
        %1777 = vmatprep.subr.mxu0 %v701
        %1778 = vmatpush1.msra.mxu0 %v700
        %1779 = vmatprep.subr.mxu0 %v709
        %1780 = vmatpush1.msra.mxu0 %v708
        %1781 = vmatprep.subr.mxu0 %v717
        %1782 = vmatpush1.msra.mxu0 %v716
        %1783 = vmatprep.subr.mxu0 %v725
        %1784 = vmatpush1.msra.mxu0 %v724
        %1785 = vmatprep.subr.mxu0 %v733
        %1786 = vmatpush1.msra.mxu0 %v732
        %1787 = vmatprep.subr.mxu0 %v741
        %1788 = vmatpush1.msra.mxu0 %v740
        %1789 = vmatprep.subr.mxu0 %v749
        %1790 = vmatpush1.msra.mxu0 %v748
        %1791 = vmatprep.subr.mxu0 %v757
        %1792 = vmatpush1.msra.mxu0 %v756
        %1793 = vmatprep.subr.mxu0 %v765
        %1794 = vmatpush1.msra.mxu0 %v764
        %1795 = vmatprep.subr.mxu0 %v773
        %1796 = vmatpush1.msra.mxu0 %v772
        %1797 = vmatprep.subr.mxu0 %v781
        %1798 = vmatpush1.msra.mxu0 %v780
        %1799 = vmatprep.subr.mxu0 %v789
        %1800 = vmatpush1.msra.mxu0 %v788
        %1801 = vmatprep.subr.mxu0 %v797
        %1802 = vmatpush1.msra.mxu0 %v796
        %1803 = vmatprep.subr.mxu0 %v805
        %1804 = vmatpush1.msra.mxu0 %v804
        %1805 = vmatprep.subr.mxu0 %v813
        %1806 = vmatpush1.msra.mxu0 %v812
        %1807 = vmatprep.subr.mxu0 %v821
        %1808 = vmatpush1.msra.mxu0 %v820
        %1809 = vmatprep.subr.mxu0 %v829
        %1810 = vmatpush1.msra.mxu0 %v828
        %1811 = vmatprep.subr.mxu0 %v837
        %1812 = vmatpush1.msra.mxu0 %v836
        %1813 = vmatprep.subr.mxu0 %v845
        %1814 = vmatpush1.msra.mxu0 %v844
        %1815 = vmatprep.subr.mxu0 %v853
        %1816 = vmatpush1.msra.mxu0 %v852
        %1817 = vmatprep.subr.mxu0 %v861
        %1818 = vmatpush1.msra.mxu0 %v860
        %1819 = vmatprep.subr.mxu0 %v869
        %1820 = vmatpush1.msra.mxu0 %v868
        %1821 = vmatprep.subr.mxu0 %v877
        %1822 = vmatpush1.msra.mxu0 %v876
        %1823 = vmatprep.subr.mxu0 %v885
        %1824 = vmatpush1.msra.mxu0 %v884
        %1825 = vmatprep.subr.mxu0 %v893
        %1826 = vmatpush1.msra.mxu0 %v892
        %1827 = vmatprep.subr.mxu0 %v901
        %1828 = vmatpush1.msra.mxu0 %v900
        %1829 = vmatprep.subr.mxu0 %v909
        %1830 = vmatpush1.msra.mxu0 %v908
        %1831 = vmatprep.subr.mxu0 %v917
        %1832 = vmatpush1.msra.mxu0 %v916
        %1833 = vmatprep.subr.mxu0 %v925
        %1834 = vmatpush1.msra.mxu0 %v924
        %1835 = vmatprep.subr.mxu0 %v933
        %1836 = vmatpush1.msra.mxu0 %v932
        %1837 = vmatprep.subr.mxu0 %v941
        %1838 = vmatpush1.msra.mxu0 %v940
        %1839 = vmatprep.subr.mxu0 %v949
        %1840 = vmatpush1.msra.mxu0 %v948
        %1841 = vmatprep.mubr.f32.mxu0 %v1483
        %1842 = vmatmul.mubr.f32.gmra.mrb[0].mxu0 %v1482
        %v1843 = vpop.f32.mrb[0].mxu0
        %v1844 = vadd.f32 0.0, %v1843
        %v1845 = vpop.f32.mrb[0].mxu0
        %v1846 = vadd.f32 0.0, %v1845
        %1847 = vdwg.mxu0
        %1848 = vmatprep.subr.mxu0 %v957
        %1849 = vmatpush1.msra.mxu0 %v956
        %1850 = vmatprep.subr.mxu0 %v965
        %1851 = vmatpush1.msra.mxu0 %v964
        %1852 = vmatprep.subr.mxu0 %v973
        %1853 = vmatpush1.msra.mxu0 %v972
        %1854 = vmatprep.subr.mxu0 %v981
        %1855 = vmatpush1.msra.mxu0 %v980
        %1856 = vmatprep.subr.mxu0 %v989
        %1857 = vmatpush1.msra.mxu0 %v988
        %1858 = vmatprep.subr.mxu0 %v997
        %1859 = vmatpush1.msra.mxu0 %v996
        %1860 = vmatprep.subr.mxu0 %v1005
        %1861 = vmatpush1.msra.mxu0 %v1004
        %1862 = vmatprep.subr.mxu0 %v1013
        %1863 = vmatpush1.msra.mxu0 %v1012
        %1864 = vmatprep.subr.mxu0 %v1021
        %1865 = vmatpush1.msra.mxu0 %v1020
        %1866 = vmatprep.subr.mxu0 %v1029
        %1867 = vmatpush1.msra.mxu0 %v1028
        %1868 = vmatprep.subr.mxu0 %v1037
        %1869 = vmatpush1.msra.mxu0 %v1036
        %1870 = vmatprep.subr.mxu0 %v1045
        %1871 = vmatpush1.msra.mxu0 %v1044
        %1872 = vmatprep.subr.mxu0 %v1053
        %1873 = vmatpush1.msra.mxu0 %v1052
        %1874 = vmatprep.subr.mxu0 %v1061
        %1875 = vmatpush1.msra.mxu0 %v1060
        %1876 = vmatprep.subr.mxu0 %v1069
        %1877 = vmatpush1.msra.mxu0 %v1068
        %1878 = vmatprep.subr.mxu0 %v1077
        %1879 = vmatpush1.msra.mxu0 %v1076
        %1880 = vmatprep.subr.mxu0 %v1085
        %1881 = vmatpush1.msra.mxu0 %v1084
        %1882 = vmatprep.subr.mxu0 %v1093
        %1883 = vmatpush1.msra.mxu0 %v1092
        %1884 = vmatprep.subr.mxu0 %v1101
        %1885 = vmatpush1.msra.mxu0 %v1100
        %1886 = vmatprep.subr.mxu0 %v1109
        %1887 = vmatpush1.msra.mxu0 %v1108
        %1888 = vmatprep.subr.mxu0 %v1117
        %1889 = vmatpush1.msra.mxu0 %v1116
        %1890 = vmatprep.subr.mxu0 %v1125
        %1891 = vmatpush1.msra.mxu0 %v1124
        %1892 = vmatprep.subr.mxu0 %v1133
        %1893 = vmatpush1.msra.mxu0 %v1132
        %1894 = vmatprep.subr.mxu0 %v1141
        %1895 = vmatpush1.msra.mxu0 %v1140
        %1896 = vmatprep.subr.mxu0 %v1149
        %1897 = vmatpush1.msra.mxu0 %v1148
        %1898 = vmatprep.subr.mxu0 %v1157
        %1899 = vmatpush1.msra.mxu0 %v1156
        %1900 = vmatprep.subr.mxu0 %v1165
        %1901 = vmatpush1.msra.mxu0 %v1164
        %1902 = vmatprep.subr.mxu0 %v1173
        %1903 = vmatpush1.msra.mxu0 %v1172
        %1904 = vmatprep.subr.mxu0 %v1181
        %1905 = vmatpush1.msra.mxu0 %v1180
        %1906 = vmatprep.subr.mxu0 %v1189
        %1907 = vmatpush1.msra.mxu0 %v1188
        %1908 = vmatprep.subr.mxu0 %v1197
        %1909 = vmatpush1.msra.mxu0 %v1196
        %1910 = vmatprep.subr.mxu0 %v1205
        %1911 = vmatpush1.msra.mxu0 %v1204
        %1912 = vmatprep.mubr.f32.mxu0 %v1485
        %1913 = vmatmul.mubr.f32.gmra.mrb[0].mxu0 %v1484
        %v1914 = vpop.f32.mrb[0].mxu0
        %v1915 = vadd.f32 %v1844, %v1914
        %v1916 = vpop.f32.mrb[0].mxu0
        %v1917 = vadd.f32 %v1846, %v1916
        %1918 = vdwg.mxu0
        %1919 = vmatprep.subr.mxu0 %v1213
        %1920 = vmatpush1.msra.mxu0 %v1212
        %1921 = vmatprep.subr.mxu0 %v1221
        %1922 = vmatpush1.msra.mxu0 %v1220
        %1923 = vmatprep.subr.mxu0 %v1229
        %1924 = vmatpush1.msra.mxu0 %v1228
        %1925 = vmatprep.subr.mxu0 %v1237
        %1926 = vmatpush1.msra.mxu0 %v1236
        %1927 = vmatprep.subr.mxu0 %v1245
        %1928 = vmatpush1.msra.mxu0 %v1244
        %1929 = vmatprep.subr.mxu0 %v1253
        %1930 = vmatpush1.msra.mxu0 %v1252
        %1931 = vmatprep.subr.mxu0 %v1261
        %1932 = vmatpush1.msra.mxu0 %v1260
        %1933 = vmatprep.subr.mxu0 %v1269
        %1934 = vmatpush1.msra.mxu0 %v1268
        %1935 = vmatprep.subr.mxu0 %v1277
        %1936 = vmatpush1.msra.mxu0 %v1276
        %1937 = vmatprep.subr.mxu0 %v1285
        %1938 = vmatpush1.msra.mxu0 %v1284
        %1939 = vmatprep.subr.mxu0 %v1293
        %1940 = vmatpush1.msra.mxu0 %v1292
        %1941 = vmatprep.subr.mxu0 %v1301
        %1942 = vmatpush1.msra.mxu0 %v1300
        %1943 = vmatprep.subr.mxu0 %v1309
        %1944 = vmatpush1.msra.mxu0 %v1308
        %1945 = vmatprep.subr.mxu0 %v1317
        %1946 = vmatpush1.msra.mxu0 %v1316
        %1947 = vmatprep.subr.mxu0 %v1325
        %1948 = vmatpush1.msra.mxu0 %v1324
        %1949 = vmatprep.subr.mxu0 %v1333
        %1950 = vmatpush1.msra.mxu0 %v1332
        %1951 = vmatprep.subr.mxu0 %v1341
        %1952 = vmatpush1.msra.mxu0 %v1340
        %1953 = vmatprep.subr.mxu0 %v1349
        %1954 = vmatpush1.msra.mxu0 %v1348
        %1955 = vmatprep.subr.mxu0 %v1357
        %1956 = vmatpush1.msra.mxu0 %v1356
        %1957 = vmatprep.subr.mxu0 %v1365
        %1958 = vmatpush1.msra.mxu0 %v1364
        %1959 = vmatprep.subr.mxu0 %v1373
        %1960 = vmatpush1.msra.mxu0 %v1372
        %1961 = vmatprep.subr.mxu0 %v1381
        %1962 = vmatpush1.msra.mxu0 %v1380
        %1963 = vmatprep.subr.mxu0 %v1389
        %1964 = vmatpush1.msra.mxu0 %v1388
        %1965 = vmatprep.subr.mxu0 %v1397
        %1966 = vmatpush1.msra.mxu0 %v1396
        %1967 = vmatprep.subr.mxu0 %v1405
        %1968 = vmatpush1.msra.mxu0 %v1404
        %1969 = vmatprep.subr.mxu0 %v1413
        %1970 = vmatpush1.msra.mxu0 %v1412
        %1971 = vmatprep.subr.mxu0 %v1421
        %1972 = vmatpush1.msra.mxu0 %v1420
        %1973 = vmatprep.subr.mxu0 %v1429
        %1974 = vmatpush1.msra.mxu0 %v1428
        %1975 = vmatprep.subr.mxu0 %v1437
        %1976 = vmatpush1.msra.mxu0 %v1436
        %1977 = vmatprep.subr.mxu0 %v1445
        %1978 = vmatpush1.msra.mxu0 %v1444
        %1979 = vmatprep.subr.mxu0 %v1453
        %1980 = vmatpush1.msra.mxu0 %v1452
        %1981 = vmatprep.subr.mxu0 %v1461
        %1982 = vmatpush1.msra.mxu0 %v1460
        %1983 = vmatprep.mubr.f32.mxu0 %v1487
        %1984 = vmatmul.mubr.f32.gmra.mrb[0].mxu0 %v1486
        %v1985 = vpop.f32.mrb[0].mxu0
        %v1986 = vadd.f32 %v1915, %v1985
        %v1987 = vpop.f32.mrb[0].mxu0
        %v1988 = vadd.f32 %v1917, %v1987
        %1989 = vdwg.mxu0
        %1990 = vmatprep.subr.mxu0 %v1469
        %1991 = vmatpush1.msra.mxu0 %v1468
        %1992 = vmatprep.subr.mxu0 %v1477
        %1993 = vmatpush1.msra.mxu0 %v1476
        %1994 = vmatprep.subr.mxu0 0.0
        %1995 = vmatpush1.msra.mxu0 0.0
        %1996 = vmatprep.subr.mxu0 0.0
        %1997 = vmatpush1.msra.mxu0 0.0
        %1998 = vmatprep.subr.mxu0 0.0
        %1999 = vmatpush1.msra.mxu0 0.0
        %2000 = vmatprep.subr.mxu0 0.0
        %2001 = vmatpush1.msra.mxu0 0.0
        %2002 = vmatprep.subr.mxu0 0.0
        %2003 = vmatpush1.msra.mxu0 0.0
        %2004 = vmatprep.subr.mxu0 0.0
        %2005 = vmatpush1.msra.mxu0 0.0
        %2006 = vmatprep.subr.mxu0 0.0
        %2007 = vmatpush1.msra.mxu0 0.0
        %2008 = vmatprep.subr.mxu0 0.0
        %2009 = vmatpush1.msra.mxu0 0.0
        %2010 = vmatprep.subr.mxu0 0.0
        %2011 = vmatpush1.msra.mxu0 0.0
        %2012 = vmatprep.subr.mxu0 0.0
        %2013 = vmatpush1.msra.mxu0 0.0
        %2014 = vmatprep.subr.mxu0 0.0
        %2015 = vmatpush1.msra.mxu0 0.0
        %2016 = vmatprep.subr.mxu0 0.0
        %2017 = vmatpush1.msra.mxu0 0.0
        %2018 = vmatprep.subr.mxu0 0.0
        %2019 = vmatpush1.msra.mxu0 0.0
        %2020 = vmatprep.subr.mxu0 0.0
        %2021 = vmatpush1.msra.mxu0 0.0
        %2022 = vmatprep.subr.mxu0 0.0
        %2023 = vmatpush1.msra.mxu0 0.0
        %2024 = vmatprep.subr.mxu0 0.0
        %2025 = vmatpush1.msra.mxu0 0.0
        %2026 = vmatprep.subr.mxu0 0.0
        %2027 = vmatpush1.msra.mxu0 0.0
        %2028 = vmatprep.subr.mxu0 0.0
        %2029 = vmatpush1.msra.mxu0 0.0
        %2030 = vmatprep.subr.mxu0 0.0
        %2031 = vmatpush1.msra.mxu0 0.0
        %2032 = vmatprep.subr.mxu0 0.0
        %2033 = vmatpush1.msra.mxu0 0.0
        %2034 = vmatprep.subr.mxu0 0.0
        %2035 = vmatpush1.msra.mxu0 0.0
        %2036 = vmatprep.subr.mxu0 0.0
        %2037 = vmatpush1.msra.mxu0 0.0
        %2038 = vmatprep.subr.mxu0 0.0
        %2039 = vmatpush1.msra.mxu0 0.0
        %2040 = vmatprep.subr.mxu0 0.0
        %2041 = vmatpush1.msra.mxu0 0.0
        %2042 = vmatprep.subr.mxu0 0.0
        %2043 = vmatpush1.msra.mxu0 0.0
        %2044 = vmatprep.subr.mxu0 0.0
        %2045 = vmatpush1.msra.mxu0 0.0
        %2046 = vmatprep.subr.mxu0 0.0
        %2047 = vmatpush1.msra.mxu0 0.0
        %2048 = vmatprep.subr.mxu0 0.0
        %2049 = vmatpush1.msra.mxu0 0.0
        %2050 = vmatprep.subr.mxu0 0.0
        %2051 = vmatpush1.msra.mxu0 0.0
        %2052 = vmatprep.subr.mxu0 0.0
        %2053 = vmatpush1.msra.mxu0 0.0
        %2054 = vmatprep.mubr.f32.mxu0 0.0
        %2055 = vmatmul.mubr.f32.gmra.mrb[0].mxu0 %v1491
        %v2056 = vpop.f32.mrb[0].mxu0
        %v2057 = vadd.f32 %v1986, %v2056
        %v2058 = vpop.f32.mrb[0].mxu0
        %v2059 = vadd.f32 %v1988, %v2058
        %2060 = vdwg.mxu0
        %2061 = vmatprep.subr.mxu0 %v703
        %2062 = vmatpush1.msra.mxu0 %v702
        %2063 = vmatprep.subr.mxu0 %v711
        %2064 = vmatpush1.msra.mxu0 %v710
        %2065 = vmatprep.subr.mxu0 %v719
        %2066 = vmatpush1.msra.mxu0 %v718
        %2067 = vmatprep.subr.mxu0 %v727
        %2068 = vmatpush1.msra.mxu0 %v726
        %2069 = vmatprep.subr.mxu0 %v735
        %2070 = vmatpush1.msra.mxu0 %v734
        %2071 = vmatprep.subr.mxu0 %v743
        %2072 = vmatpush1.msra.mxu0 %v742
        %2073 = vmatprep.subr.mxu0 %v751
        %2074 = vmatpush1.msra.mxu0 %v750
        %2075 = vmatprep.subr.mxu0 %v759
        %2076 = vmatpush1.msra.mxu0 %v758
        %2077 = vmatprep.subr.mxu0 %v767
        %2078 = vmatpush1.msra.mxu0 %v766
        %2079 = vmatprep.subr.mxu0 %v775
        %2080 = vmatpush1.msra.mxu0 %v774
        %2081 = vmatprep.subr.mxu0 %v783
        %2082 = vmatpush1.msra.mxu0 %v782
        %2083 = vmatprep.subr.mxu0 %v791
        %2084 = vmatpush1.msra.mxu0 %v790
        %2085 = vmatprep.subr.mxu0 %v799
        %2086 = vmatpush1.msra.mxu0 %v798
        %2087 = vmatprep.subr.mxu0 %v807
        %2088 = vmatpush1.msra.mxu0 %v806
        %2089 = vmatprep.subr.mxu0 %v815
        %2090 = vmatpush1.msra.mxu0 %v814
        %2091 = vmatprep.subr.mxu0 %v823
        %2092 = vmatpush1.msra.mxu0 %v822
        %2093 = vmatprep.subr.mxu0 %v831
        %2094 = vmatpush1.msra.mxu0 %v830
        %2095 = vmatprep.subr.mxu0 %v839
        %2096 = vmatpush1.msra.mxu0 %v838
        %2097 = vmatprep.subr.mxu0 %v847
        %2098 = vmatpush1.msra.mxu0 %v846
        %2099 = vmatprep.subr.mxu0 %v855
        %2100 = vmatpush1.msra.mxu0 %v854
        %2101 = vmatprep.subr.mxu0 %v863
        %2102 = vmatpush1.msra.mxu0 %v862
        %2103 = vmatprep.subr.mxu0 %v871
        %2104 = vmatpush1.msra.mxu0 %v870
        %2105 = vmatprep.subr.mxu0 %v879
        %2106 = vmatpush1.msra.mxu0 %v878
        %2107 = vmatprep.subr.mxu0 %v887
        %2108 = vmatpush1.msra.mxu0 %v886
        %2109 = vmatprep.subr.mxu0 %v895
        %2110 = vmatpush1.msra.mxu0 %v894
        %2111 = vmatprep.subr.mxu0 %v903
        %2112 = vmatpush1.msra.mxu0 %v902
        %2113 = vmatprep.subr.mxu0 %v911
        %2114 = vmatpush1.msra.mxu0 %v910
        %2115 = vmatprep.subr.mxu0 %v919
        %2116 = vmatpush1.msra.mxu0 %v918
        %2117 = vmatprep.subr.mxu0 %v927
        %2118 = vmatpush1.msra.mxu0 %v926
        %2119 = vmatprep.subr.mxu0 %v935
        %2120 = vmatpush1.msra.mxu0 %v934
        %2121 = vmatprep.subr.mxu0 %v943
        %2122 = vmatpush1.msra.mxu0 %v942
        %2123 = vmatprep.subr.mxu0 %v951
        %2124 = vmatpush1.msra.mxu0 %v950
        %2125 = vmatprep.mubr.f32.mxu0 %v1483
        %2126 = vmatmul.mubr.f32.gmra.mrb[0].mxu0 %v1482
        %v2127 = vpop.f32.mrb[0].mxu0
        %v2128 = vadd.f32 0.0, %v2127
        %v2129 = vpop.f32.mrb[0].mxu0
        %v2130 = vadd.f32 0.0, %v2129
        %2131 = vdwg.mxu0
        %2132 = vmatprep.subr.mxu0 %v959
        %2133 = vmatpush1.msra.mxu0 %v958
        %2134 = vmatprep.subr.mxu0 %v967
        %2135 = vmatpush1.msra.mxu0 %v966
        %2136 = vmatprep.subr.mxu0 %v975
        %2137 = vmatpush1.msra.mxu0 %v974
        %2138 = vmatprep.subr.mxu0 %v983
        %2139 = vmatpush1.msra.mxu0 %v982
        %2140 = vmatprep.subr.mxu0 %v991
        %2141 = vmatpush1.msra.mxu0 %v990
        %2142 = vmatprep.subr.mxu0 %v999
        %2143 = vmatpush1.msra.mxu0 %v998
        %2144 = vmatprep.subr.mxu0 %v1007
        %2145 = vmatpush1.msra.mxu0 %v1006
        %2146 = vmatprep.subr.mxu0 %v1015
        %2147 = vmatpush1.msra.mxu0 %v1014
        %2148 = vmatprep.subr.mxu0 %v1023
        %2149 = vmatpush1.msra.mxu0 %v1022
        %2150 = vmatprep.subr.mxu0 %v1031
        %2151 = vmatpush1.msra.mxu0 %v1030
        %2152 = vmatprep.subr.mxu0 %v1039
        %2153 = vmatpush1.msra.mxu0 %v1038
        %2154 = vmatprep.subr.mxu0 %v1047
        %2155 = vmatpush1.msra.mxu0 %v1046
        %2156 = vmatprep.subr.mxu0 %v1055
        %2157 = vmatpush1.msra.mxu0 %v1054
        %2158 = vmatprep.subr.mxu0 %v1063
        %2159 = vmatpush1.msra.mxu0 %v1062
        %2160 = vmatprep.subr.mxu0 %v1071
        %2161 = vmatpush1.msra.mxu0 %v1070
        %2162 = vmatprep.subr.mxu0 %v1079
        %2163 = vmatpush1.msra.mxu0 %v1078
        %2164 = vmatprep.subr.mxu0 %v1087
        %2165 = vmatpush1.msra.mxu0 %v1086
        %2166 = vmatprep.subr.mxu0 %v1095
        %2167 = vmatpush1.msra.mxu0 %v1094
        %2168 = vmatprep.subr.mxu0 %v1103
        %2169 = vmatpush1.msra.mxu0 %v1102
        %2170 = vmatprep.subr.mxu0 %v1111
        %2171 = vmatpush1.msra.mxu0 %v1110
        %2172 = vmatprep.subr.mxu0 %v1119
        %2173 = vmatpush1.msra.mxu0 %v1118
        %2174 = vmatprep.subr.mxu0 %v1127
        %2175 = vmatpush1.msra.mxu0 %v1126
        %2176 = vmatprep.subr.mxu0 %v1135
        %2177 = vmatpush1.msra.mxu0 %v1134
        %2178 = vmatprep.subr.mxu0 %v1143
        %2179 = vmatpush1.msra.mxu0 %v1142
        %2180 = vmatprep.subr.mxu0 %v1151
        %2181 = vmatpush1.msra.mxu0 %v1150
        %2182 = vmatprep.subr.mxu0 %v1159
        %2183 = vmatpush1.msra.mxu0 %v1158
        %2184 = vmatprep.subr.mxu0 %v1167
        %2185 = vmatpush1.msra.mxu0 %v1166
        %2186 = vmatprep.subr.mxu0 %v1175
        %2187 = vmatpush1.msra.mxu0 %v1174
        %2188 = vmatprep.subr.mxu0 %v1183
        %2189 = vmatpush1.msra.mxu0 %v1182
        %2190 = vmatprep.subr.mxu0 %v1191
        %2191 = vmatpush1.msra.mxu0 %v1190
        %2192 = vmatprep.subr.mxu0 %v1199
        %2193 = vmatpush1.msra.mxu0 %v1198
        %2194 = vmatprep.subr.mxu0 %v1207
        %2195 = vmatpush1.msra.mxu0 %v1206
        %2196 = vmatprep.mubr.f32.mxu0 %v1485
        %2197 = vmatmul.mubr.f32.gmra.mrb[0].mxu0 %v1484
        %v2198 = vpop.f32.mrb[0].mxu0
        %v2199 = vadd.f32 %v2128, %v2198
        %v2200 = vpop.f32.mrb[0].mxu0
        %v2201 = vadd.f32 %v2130, %v2200
        %2202 = vdwg.mxu0
        %2203 = vmatprep.subr.mxu0 %v1215
        %2204 = vmatpush1.msra.mxu0 %v1214
        %2205 = vmatprep.subr.mxu0 %v1223
        %2206 = vmatpush1.msra.mxu0 %v1222
        %2207 = vmatprep.subr.mxu0 %v1231
        %2208 = vmatpush1.msra.mxu0 %v1230
        %2209 = vmatprep.subr.mxu0 %v1239
        %2210 = vmatpush1.msra.mxu0 %v1238
        %2211 = vmatprep.subr.mxu0 %v1247
        %2212 = vmatpush1.msra.mxu0 %v1246
        %2213 = vmatprep.subr.mxu0 %v1255
        %2214 = vmatpush1.msra.mxu0 %v1254
        %2215 = vmatprep.subr.mxu0 %v1263
        %2216 = vmatpush1.msra.mxu0 %v1262
        %2217 = vmatprep.subr.mxu0 %v1271
        %2218 = vmatpush1.msra.mxu0 %v1270
        %2219 = vmatprep.subr.mxu0 %v1279
        %2220 = vmatpush1.msra.mxu0 %v1278
        %2221 = vmatprep.subr.mxu0 %v1287
        %2222 = vmatpush1.msra.mxu0 %v1286
        %2223 = vmatprep.subr.mxu0 %v1295
        %2224 = vmatpush1.msra.mxu0 %v1294
        %2225 = vmatprep.subr.mxu0 %v1303
        %2226 = vmatpush1.msra.mxu0 %v1302
        %2227 = vmatprep.subr.mxu0 %v1311
        %2228 = vmatpush1.msra.mxu0 %v1310
        %2229 = vmatprep.subr.mxu0 %v1319
        %2230 = vmatpush1.msra.mxu0 %v1318
        %2231 = vmatprep.subr.mxu0 %v1327
        %2232 = vmatpush1.msra.mxu0 %v1326
        %2233 = vmatprep.subr.mxu0 %v1335
        %2234 = vmatpush1.msra.mxu0 %v1334
        %2235 = vmatprep.subr.mxu0 %v1343
        %2236 = vmatpush1.msra.mxu0 %v1342
        %2237 = vmatprep.subr.mxu0 %v1351
        %2238 = vmatpush1.msra.mxu0 %v1350
        %2239 = vmatprep.subr.mxu0 %v1359
        %2240 = vmatpush1.msra.mxu0 %v1358
        %2241 = vmatprep.subr.mxu0 %v1367
        %2242 = vmatpush1.msra.mxu0 %v1366
        %2243 = vmatprep.subr.mxu0 %v1375
        %2244 = vmatpush1.msra.mxu0 %v1374
        %2245 = vmatprep.subr.mxu0 %v1383
        %2246 = vmatpush1.msra.mxu0 %v1382
        %2247 = vmatprep.subr.mxu0 %v1391
        %2248 = vmatpush1.msra.mxu0 %v1390
        %2249 = vmatprep.subr.mxu0 %v1399
        %2250 = vmatpush1.msra.mxu0 %v1398
        %2251 = vmatprep.subr.mxu0 %v1407
        %2252 = vmatpush1.msra.mxu0 %v1406
        %2253 = vmatprep.subr.mxu0 %v1415
        %2254 = vmatpush1.msra.mxu0 %v1414
        %2255 = vmatprep.subr.mxu0 %v1423
        %2256 = vmatpush1.msra.mxu0 %v1422
        %2257 = vmatprep.subr.mxu0 %v1431
        %2258 = vmatpush1.msra.mxu0 %v1430
        %2259 = vmatprep.subr.mxu0 %v1439
        %2260 = vmatpush1.msra.mxu0 %v1438
        %2261 = vmatprep.subr.mxu0 %v1447
        %2262 = vmatpush1.msra.mxu0 %v1446
        %2263 = vmatprep.subr.mxu0 %v1455
        %2264 = vmatpush1.msra.mxu0 %v1454
        %2265 = vmatprep.subr.mxu0 %v1463
        %2266 = vmatpush1.msra.mxu0 %v1462
        %2267 = vmatprep.mubr.f32.mxu0 %v1487
        %2268 = vmatmul.mubr.f32.gmra.mrb[0].mxu0 %v1486
        %v2269 = vpop.f32.mrb[0].mxu0
        %v2270 = vadd.f32 %v2199, %v2269
        %v2271 = vpop.f32.mrb[0].mxu0
        %v2272 = vadd.f32 %v2201, %v2271
        %2273 = vdwg.mxu0
        %2274 = vmatprep.subr.mxu0 %v1471
        %2275 = vmatpush1.msra.mxu0 %v1470
        %2276 = vmatprep.subr.mxu0 %v1479
        %2277 = vmatpush1.msra.mxu0 %v1478
        %2278 = vmatprep.subr.mxu0 0.0
        %2279 = vmatpush1.msra.mxu0 0.0
        %2280 = vmatprep.subr.mxu0 0.0
        %2281 = vmatpush1.msra.mxu0 0.0
        %2282 = vmatprep.subr.mxu0 0.0
        %2283 = vmatpush1.msra.mxu0 0.0
        %2284 = vmatprep.subr.mxu0 0.0
        %2285 = vmatpush1.msra.mxu0 0.0
        %2286 = vmatprep.subr.mxu0 0.0
        %2287 = vmatpush1.msra.mxu0 0.0
        %2288 = vmatprep.subr.mxu0 0.0
        %2289 = vmatpush1.msra.mxu0 0.0
        %2290 = vmatprep.subr.mxu0 0.0
        %2291 = vmatpush1.msra.mxu0 0.0
        %2292 = vmatprep.subr.mxu0 0.0
        %2293 = vmatpush1.msra.mxu0 0.0
        %2294 = vmatprep.subr.mxu0 0.0
        %2295 = vmatpush1.msra.mxu0 0.0
        %2296 = vmatprep.subr.mxu0 0.0
        %2297 = vmatpush1.msra.mxu0 0.0
        %2298 = vmatprep.subr.mxu0 0.0
        %2299 = vmatpush1.msra.mxu0 0.0
        %2300 = vmatprep.subr.mxu0 0.0
        %2301 = vmatpush1.msra.mxu0 0.0
        %2302 = vmatprep.subr.mxu0 0.0
        %2303 = vmatpush1.msra.mxu0 0.0
        %2304 = vmatprep.subr.mxu0 0.0
        %2305 = vmatpush1.msra.mxu0 0.0
        %2306 = vmatprep.subr.mxu0 0.0
        %2307 = vmatpush1.msra.mxu0 0.0
        %2308 = vmatprep.subr.mxu0 0.0
        %2309 = vmatpush1.msra.mxu0 0.0
        %2310 = vmatprep.subr.mxu0 0.0
        %2311 = vmatpush1.msra.mxu0 0.0
        %2312 = vmatprep.subr.mxu0 0.0
        %2313 = vmatpush1.msra.mxu0 0.0
        %2314 = vmatprep.subr.mxu0 0.0
        %2315 = vmatpush1.msra.mxu0 0.0
        %2316 = vmatprep.subr.mxu0 0.0
        %2317 = vmatpush1.msra.mxu0 0.0
        %2318 = vmatprep.subr.mxu0 0.0
        %2319 = vmatpush1.msra.mxu0 0.0
        %2320 = vmatprep.subr.mxu0 0.0
        %2321 = vmatpush1.msra.mxu0 0.0
        %2322 = vmatprep.subr.mxu0 0.0
        %2323 = vmatpush1.msra.mxu0 0.0
        %2324 = vmatprep.subr.mxu0 0.0
        %2325 = vmatpush1.msra.mxu0 0.0
        %2326 = vmatprep.subr.mxu0 0.0
        %2327 = vmatpush1.msra.mxu0 0.0
        %2328 = vmatprep.subr.mxu0 0.0
        %2329 = vmatpush1.msra.mxu0 0.0
        %2330 = vmatprep.subr.mxu0 0.0
        %2331 = vmatpush1.msra.mxu0 0.0
        %2332 = vmatprep.subr.mxu0 0.0
        %2333 = vmatpush1.msra.mxu0 0.0
        %2334 = vmatprep.subr.mxu0 0.0
        %2335 = vmatpush1.msra.mxu0 0.0
        %2336 = vmatprep.subr.mxu0 0.0
        %2337 = vmatpush1.msra.mxu0 0.0
        %2338 = vmatprep.mubr.f32.mxu0 0.0
        %2339 = vmatmul.mubr.f32.gmra.mrb[0].mxu0 %v1491
        %v2340 = vpop.f32.mrb[0].mxu0
        %v2341 = vadd.f32 %v2270, %v2340
        %v2342 = vpop.f32.mrb[0].mxu0
        %v2343 = vadd.f32 %v2272, %v2342
        %2344 = vdwg.mxu0
        %2345 = vmatprep.subr.mxu0 %v705
        %2346 = vmatpush1.msra.mxu0 %v704
        %2347 = vmatprep.subr.mxu0 %v713
        %2348 = vmatpush1.msra.mxu0 %v712
        %2349 = vmatprep.subr.mxu0 %v721
        %2350 = vmatpush1.msra.mxu0 %v720
        %2351 = vmatprep.subr.mxu0 %v729
        %2352 = vmatpush1.msra.mxu0 %v728
        %2353 = vmatprep.subr.mxu0 %v737
        %2354 = vmatpush1.msra.mxu0 %v736
        %2355 = vmatprep.subr.mxu0 %v745
        %2356 = vmatpush1.msra.mxu0 %v744
        %2357 = vmatprep.subr.mxu0 %v753
        %2358 = vmatpush1.msra.mxu0 %v752
        %2359 = vmatprep.subr.mxu0 %v761
        %2360 = vmatpush1.msra.mxu0 %v760
        %2361 = vmatprep.subr.mxu0 %v769
        %2362 = vmatpush1.msra.mxu0 %v768
        %2363 = vmatprep.subr.mxu0 %v777
        %2364 = vmatpush1.msra.mxu0 %v776
        %2365 = vmatprep.subr.mxu0 %v785
        %2366 = vmatpush1.msra.mxu0 %v784
        %2367 = vmatprep.subr.mxu0 %v793
        %2368 = vmatpush1.msra.mxu0 %v792
        %2369 = vmatprep.subr.mxu0 %v801
        %2370 = vmatpush1.msra.mxu0 %v800
        %2371 = vmatprep.subr.mxu0 %v809
        %2372 = vmatpush1.msra.mxu0 %v808
        %2373 = vmatprep.subr.mxu0 %v817
        %2374 = vmatpush1.msra.mxu0 %v816
        %2375 = vmatprep.subr.mxu0 %v825
        %2376 = vmatpush1.msra.mxu0 %v824
        %2377 = vmatprep.subr.mxu0 %v833
        %2378 = vmatpush1.msra.mxu0 %v832
        %2379 = vmatprep.subr.mxu0 %v841
        %2380 = vmatpush1.msra.mxu0 %v840
        %2381 = vmatprep.subr.mxu0 %v849
        %2382 = vmatpush1.msra.mxu0 %v848
        %2383 = vmatprep.subr.mxu0 %v857
        %2384 = vmatpush1.msra.mxu0 %v856
        %2385 = vmatprep.subr.mxu0 %v865
        %2386 = vmatpush1.msra.mxu0 %v864
        %2387 = vmatprep.subr.mxu0 %v873
        %2388 = vmatpush1.msra.mxu0 %v872
        %2389 = vmatprep.subr.mxu0 %v881
        %2390 = vmatpush1.msra.mxu0 %v880
        %2391 = vmatprep.subr.mxu0 %v889
        %2392 = vmatpush1.msra.mxu0 %v888
        %2393 = vmatprep.subr.mxu0 %v897
        %2394 = vmatpush1.msra.mxu0 %v896
        %2395 = vmatprep.subr.mxu0 %v905
        %2396 = vmatpush1.msra.mxu0 %v904
        %2397 = vmatprep.subr.mxu0 %v913
        %2398 = vmatpush1.msra.mxu0 %v912
        %2399 = vmatprep.subr.mxu0 %v921
        %2400 = vmatpush1.msra.mxu0 %v920
        %2401 = vmatprep.subr.mxu0 %v929
        %2402 = vmatpush1.msra.mxu0 %v928
        %2403 = vmatprep.subr.mxu0 %v937
        %2404 = vmatpush1.msra.mxu0 %v936
        %2405 = vmatprep.subr.mxu0 %v945
        %2406 = vmatpush1.msra.mxu0 %v944
        %2407 = vmatprep.subr.mxu0 %v953
        %2408 = vmatpush1.msra.mxu0 %v952
        %2409 = vmatprep.mubr.f32.mxu0 %v1483
        %2410 = vmatmul.mubr.f32.gmra.mrb[0].mxu0 %v1482
        %v2411 = vpop.f32.mrb[0].mxu0
        %v2412 = vadd.f32 0.0, %v2411
        %v2413 = vpop.f32.mrb[0].mxu0
        %v2414 = vadd.f32 0.0, %v2413
        %2415 = vdwg.mxu0
        %2416 = vmatprep.subr.mxu0 %v961
        %2417 = vmatpush1.msra.mxu0 %v960
        %2418 = vmatprep.subr.mxu0 %v969
        %2419 = vmatpush1.msra.mxu0 %v968
        %2420 = vmatprep.subr.mxu0 %v977
        %2421 = vmatpush1.msra.mxu0 %v976
        %2422 = vmatprep.subr.mxu0 %v985
        %2423 = vmatpush1.msra.mxu0 %v984
        %2424 = vmatprep.subr.mxu0 %v993
        %2425 = vmatpush1.msra.mxu0 %v992
        %2426 = vmatprep.subr.mxu0 %v1001
        %2427 = vmatpush1.msra.mxu0 %v1000
        %2428 = vmatprep.subr.mxu0 %v1009
        %2429 = vmatpush1.msra.mxu0 %v1008
        %2430 = vmatprep.subr.mxu0 %v1017
        %2431 = vmatpush1.msra.mxu0 %v1016
        %2432 = vmatprep.subr.mxu0 %v1025
        %2433 = vmatpush1.msra.mxu0 %v1024
        %2434 = vmatprep.subr.mxu0 %v1033
        %2435 = vmatpush1.msra.mxu0 %v1032
        %2436 = vmatprep.subr.mxu0 %v1041
        %2437 = vmatpush1.msra.mxu0 %v1040
        %2438 = vmatprep.subr.mxu0 %v1049
        %2439 = vmatpush1.msra.mxu0 %v1048
        %2440 = vmatprep.subr.mxu0 %v1057
        %2441 = vmatpush1.msra.mxu0 %v1056
        %2442 = vmatprep.subr.mxu0 %v1065
        %2443 = vmatpush1.msra.mxu0 %v1064
        %2444 = vmatprep.subr.mxu0 %v1073
        %2445 = vmatpush1.msra.mxu0 %v1072
        %2446 = vmatprep.subr.mxu0 %v1081
        %2447 = vmatpush1.msra.mxu0 %v1080
        %2448 = vmatprep.subr.mxu0 %v1089
        %2449 = vmatpush1.msra.mxu0 %v1088
        %2450 = vmatprep.subr.mxu0 %v1097
        %2451 = vmatpush1.msra.mxu0 %v1096
        %2452 = vmatprep.subr.mxu0 %v1105
        %2453 = vmatpush1.msra.mxu0 %v1104
        %2454 = vmatprep.subr.mxu0 %v1113
        %2455 = vmatpush1.msra.mxu0 %v1112
        %2456 = vmatprep.subr.mxu0 %v1121
        %2457 = vmatpush1.msra.mxu0 %v1120
        %2458 = vmatprep.subr.mxu0 %v1129
        %2459 = vmatpush1.msra.mxu0 %v1128
        %2460 = vmatprep.subr.mxu0 %v1137
        %2461 = vmatpush1.msra.mxu0 %v1136
        %2462 = vmatprep.subr.mxu0 %v1145
        %2463 = vmatpush1.msra.mxu0 %v1144
        %2464 = vmatprep.subr.mxu0 %v1153
        %2465 = vmatpush1.msra.mxu0 %v1152
        %2466 = vmatprep.subr.mxu0 %v1161
        %2467 = vmatpush1.msra.mxu0 %v1160
        %2468 = vmatprep.subr.mxu0 %v1169
        %2469 = vmatpush1.msra.mxu0 %v1168
        %2470 = vmatprep.subr.mxu0 %v1177
        %2471 = vmatpush1.msra.mxu0 %v1176
        %2472 = vmatprep.subr.mxu0 %v1185
        %2473 = vmatpush1.msra.mxu0 %v1184
        %2474 = vmatprep.subr.mxu0 %v1193
        %2475 = vmatpush1.msra.mxu0 %v1192
        %2476 = vmatprep.subr.mxu0 %v1201
        %2477 = vmatpush1.msra.mxu0 %v1200
        %2478 = vmatprep.subr.mxu0 %v1209
        %2479 = vmatpush1.msra.mxu0 %v1208
        %2480 = vmatprep.mubr.f32.mxu0 %v1485
        %2481 = vmatmul.mubr.f32.gmra.mrb[0].mxu0 %v1484
        %v2482 = vpop.f32.mrb[0].mxu0
        %v2483 = vadd.f32 %v2412, %v2482
        %v2484 = vpop.f32.mrb[0].mxu0
        %v2485 = vadd.f32 %v2414, %v2484
        %2486 = vdwg.mxu0
        %2487 = vmatprep.subr.mxu0 %v1217
        %2488 = vmatpush1.msra.mxu0 %v1216
        %2489 = vmatprep.subr.mxu0 %v1225
        %2490 = vmatpush1.msra.mxu0 %v1224
        %2491 = vmatprep.subr.mxu0 %v1233
        %2492 = vmatpush1.msra.mxu0 %v1232
        %2493 = vmatprep.subr.mxu0 %v1241
        %2494 = vmatpush1.msra.mxu0 %v1240
        %2495 = vmatprep.subr.mxu0 %v1249
        %2496 = vmatpush1.msra.mxu0 %v1248
        %2497 = vmatprep.subr.mxu0 %v1257
        %2498 = vmatpush1.msra.mxu0 %v1256
        %2499 = vmatprep.subr.mxu0 %v1265
        %2500 = vmatpush1.msra.mxu0 %v1264
        %2501 = vmatprep.subr.mxu0 %v1273
        %2502 = vmatpush1.msra.mxu0 %v1272
        %2503 = vmatprep.subr.mxu0 %v1281
        %2504 = vmatpush1.msra.mxu0 %v1280
        %2505 = vmatprep.subr.mxu0 %v1289
        %2506 = vmatpush1.msra.mxu0 %v1288
        %2507 = vmatprep.subr.mxu0 %v1297
        %2508 = vmatpush1.msra.mxu0 %v1296
        %2509 = vmatprep.subr.mxu0 %v1305
        %2510 = vmatpush1.msra.mxu0 %v1304
        %2511 = vmatprep.subr.mxu0 %v1313
        %2512 = vmatpush1.msra.mxu0 %v1312
        %2513 = vmatprep.subr.mxu0 %v1321
        %2514 = vmatpush1.msra.mxu0 %v1320
        %2515 = vmatprep.subr.mxu0 %v1329
        %2516 = vmatpush1.msra.mxu0 %v1328
        %2517 = vmatprep.subr.mxu0 %v1337
        %2518 = vmatpush1.msra.mxu0 %v1336
        %2519 = vmatprep.subr.mxu0 %v1345
        %2520 = vmatpush1.msra.mxu0 %v1344
        %2521 = vmatprep.subr.mxu0 %v1353
        %2522 = vmatpush1.msra.mxu0 %v1352
        %2523 = vmatprep.subr.mxu0 %v1361
        %2524 = vmatpush1.msra.mxu0 %v1360
        %2525 = vmatprep.subr.mxu0 %v1369
        %2526 = vmatpush1.msra.mxu0 %v1368
        %2527 = vmatprep.subr.mxu0 %v1377
        %2528 = vmatpush1.msra.mxu0 %v1376
        %2529 = vmatprep.subr.mxu0 %v1385
        %2530 = vmatpush1.msra.mxu0 %v1384
        %2531 = vmatprep.subr.mxu0 %v1393
        %2532 = vmatpush1.msra.mxu0 %v1392
        %2533 = vmatprep.subr.mxu0 %v1401
        %2534 = vmatpush1.msra.mxu0 %v1400
        %2535 = vmatprep.subr.mxu0 %v1409
        %2536 = vmatpush1.msra.mxu0 %v1408
        %2537 = vmatprep.subr.mxu0 %v1417
        %2538 = vmatpush1.msra.mxu0 %v1416
        %2539 = vmatprep.subr.mxu0 %v1425
        %2540 = vmatpush1.msra.mxu0 %v1424
        %2541 = vmatprep.subr.mxu0 %v1433
        %2542 = vmatpush1.msra.mxu0 %v1432
        %2543 = vmatprep.subr.mxu0 %v1441
        %2544 = vmatpush1.msra.mxu0 %v1440
        %2545 = vmatprep.subr.mxu0 %v1449
        %2546 = vmatpush1.msra.mxu0 %v1448
        %2547 = vmatprep.subr.mxu0 %v1457
        %2548 = vmatpush1.msra.mxu0 %v1456
        %2549 = vmatprep.subr.mxu0 %v1465
        %2550 = vmatpush1.msra.mxu0 %v1464
        %2551 = vmatprep.mubr.f32.mxu0 %v1487
        %2552 = vmatmul.mubr.f32.gmra.mrb[0].mxu0 %v1486
        %v2553 = vpop.f32.mrb[0].mxu0
        %v2554 = vadd.f32 %v2483, %v2553
        %v2555 = vpop.f32.mrb[0].mxu0
        %v2556 = vadd.f32 %v2485, %v2555
        %2557 = vdwg.mxu0
        %2558 = vmatprep.subr.mxu0 %v1473
        %2559 = vmatpush1.msra.mxu0 %v1472
        %2560 = vmatprep.subr.mxu0 %v1481
        %2561 = vmatpush1.msra.mxu0 %v1480
        %2562 = vmatprep.subr.mxu0 0.0
        %2563 = vmatpush1.msra.mxu0 0.0
        %2564 = vmatprep.subr.mxu0 0.0
        %2565 = vmatpush1.msra.mxu0 0.0
        %2566 = vmatprep.subr.mxu0 0.0
        %2567 = vmatpush1.msra.mxu0 0.0
        %2568 = vmatprep.subr.mxu0 0.0
        %2569 = vmatpush1.msra.mxu0 0.0
        %2570 = vmatprep.subr.mxu0 0.0
        %2571 = vmatpush1.msra.mxu0 0.0
        %2572 = vmatprep.subr.mxu0 0.0
        %2573 = vmatpush1.msra.mxu0 0.0
        %2574 = vmatprep.subr.mxu0 0.0
        %2575 = vmatpush1.msra.mxu0 0.0
        %2576 = vmatprep.subr.mxu0 0.0
        %2577 = vmatpush1.msra.mxu0 0.0
        %2578 = vmatprep.subr.mxu0 0.0
        %2579 = vmatpush1.msra.mxu0 0.0
        %2580 = vmatprep.subr.mxu0 0.0
        %2581 = vmatpush1.msra.mxu0 0.0
        %2582 = vmatprep.subr.mxu0 0.0
        %2583 = vmatpush1.msra.mxu0 0.0
        %2584 = vmatprep.subr.mxu0 0.0
        %2585 = vmatpush1.msra.mxu0 0.0
        %2586 = vmatprep.subr.mxu0 0.0
        %2587 = vmatpush1.msra.mxu0 0.0
        %2588 = vmatprep.subr.mxu0 0.0
        %2589 = vmatpush1.msra.mxu0 0.0
        %2590 = vmatprep.subr.mxu0 0.0
        %2591 = vmatpush1.msra.mxu0 0.0
        %2592 = vmatprep.subr.mxu0 0.0
        %2593 = vmatpush1.msra.mxu0 0.0
        %2594 = vmatprep.subr.mxu0 0.0
        %2595 = vmatpush1.msra.mxu0 0.0
        %2596 = vmatprep.subr.mxu0 0.0
        %2597 = vmatpush1.msra.mxu0 0.0
        %2598 = vmatprep.subr.mxu0 0.0
        %2599 = vmatpush1.msra.mxu0 0.0
        %2600 = vmatprep.subr.mxu0 0.0
        %2601 = vmatpush1.msra.mxu0 0.0
        %2602 = vmatprep.subr.mxu0 0.0
        %2603 = vmatpush1.msra.mxu0 0.0
        %2604 = vmatprep.subr.mxu0 0.0
        %2605 = vmatpush1.msra.mxu0 0.0
        %2606 = vmatprep.subr.mxu0 0.0
        %2607 = vmatpush1.msra.mxu0 0.0
        %2608 = vmatprep.subr.mxu0 0.0
        %2609 = vmatpush1.msra.mxu0 0.0
        %2610 = vmatprep.subr.mxu0 0.0
        %2611 = vmatpush1.msra.mxu0 0.0
        %2612 = vmatprep.subr.mxu0 0.0
        %2613 = vmatpush1.msra.mxu0 0.0
        %2614 = vmatprep.subr.mxu0 0.0
        %2615 = vmatpush1.msra.mxu0 0.0
        %2616 = vmatprep.subr.mxu0 0.0
        %2617 = vmatpush1.msra.mxu0 0.0
        %2618 = vmatprep.subr.mxu0 0.0
        %2619 = vmatpush1.msra.mxu0 0.0
        %2620 = vmatprep.subr.mxu0 0.0
        %2621 = vmatpush1.msra.mxu0 0.0
        %2622 = vmatprep.mubr.f32.mxu0 0.0
        %2623 = vmatmul.mubr.f32.gmra.mrb[0].mxu0 %v1491
        %v2624 = vpop.f32.mrb[0].mxu0
        %v2625 = vadd.f32 %v2554, %v2624
        %v2626 = vpop.f32.mrb[0].mxu0
        %v2627 = vadd.f32 %v2556, %v2626
        %2628 = vdwg.mxu0
        %v2629 = vld [vmem:[%s258] sm:$0xff]
        %v2631 = vlaneseq
        %v2632 = vshrl.u32 %v2631, 7
        %v2633 = vsub.s32 0, %v2632
        %v2634 = vrot.slane %v2629, %v2633
        %v2635 = vlaneseq
        %v2636 = vshrl.u32 %v2635, 7
        %v2637 = vsub.s32 1, %v2636
        %v2638 = vrot.slane %v2629, %v2637
        %v2639 = vlaneseq
        %v2640 = vshrl.u32 %v2639, 7
        %v2641 = vsub.s32 2, %v2640
        %v2642 = vrot.slane %v2629, %v2641
        %v2643 = vlaneseq
        %v2644 = vshrl.u32 %v2643, 7
        %v2645 = vsub.s32 3, %v2644
        %v2646 = vrot.slane %v2629, %v2645
        %v2647 = vlaneseq
        %v2648 = vshrl.u32 %v2647, 7
        %v2649 = vsub.s32 4, %v2648
        %v2650 = vrot.slane %v2629, %v2649
        %v2651 = vlaneseq
        %v2652 = vshrl.u32 %v2651, 7
        %v2653 = vsub.s32 5, %v2652
        %v2654 = vrot.slane %v2629, %v2653
        %v2655 = vlaneseq
        %v2656 = vshrl.u32 %v2655, 7
        %v2657 = vsub.s32 6, %v2656
        %v2658 = vrot.slane %v2629, %v2657
        %v2659 = vlaneseq
        %v2660 = vshrl.u32 %v2659, 7
        %v2661 = vsub.s32 7, %v2660
        %v2662 = vrot.slane %v2629, %v2661
        %v2671 = vmul.f32 %v1773, %v2634
        %v2672 = vmul.f32 %v1775, %v2638
        %v2673 = vmul.f32 %v2057, %v2642
        %v2674 = vmul.f32 %v2059, %v2646
        %v2675 = vmul.f32 %v2341, %v2650
        %v2676 = vmul.f32 %v2343, %v2654
        %v2677 = vmul.f32 %v2625, %v2658
        %v2678 = vmul.f32 %v2627, %v2662
        %v2679 = vld [vmem:[%s267] sm:$0xff]
        %v2681 = vlaneseq
        %v2682 = vshrl.u32 %v2681, 7
        %v2683 = vsub.s32 0, %v2682
        %v2684 = vrot.slane %v2679, %v2683
        %v2685 = vlaneseq
        %v2686 = vshrl.u32 %v2685, 7
        %v2687 = vsub.s32 1, %v2686
        %v2688 = vrot.slane %v2679, %v2687
        %v2689 = vlaneseq
        %v2690 = vshrl.u32 %v2689, 7
        %v2691 = vsub.s32 2, %v2690
        %v2692 = vrot.slane %v2679, %v2691
        %v2693 = vlaneseq
        %v2694 = vshrl.u32 %v2693, 7
        %v2695 = vsub.s32 3, %v2694
        %v2696 = vrot.slane %v2679, %v2695
        %v2697 = vlaneseq
        %v2698 = vshrl.u32 %v2697, 7
        %v2699 = vsub.s32 4, %v2698
        %v2700 = vrot.slane %v2679, %v2699
        %v2701 = vlaneseq
        %v2702 = vshrl.u32 %v2701, 7
        %v2703 = vsub.s32 5, %v2702
        %v2704 = vrot.slane %v2679, %v2703
        %v2705 = vlaneseq
        %v2706 = vshrl.u32 %v2705, 7
        %v2707 = vsub.s32 6, %v2706
        %v2708 = vrot.slane %v2679, %v2707
        %v2709 = vlaneseq
        %v2710 = vshrl.u32 %v2709, 7
        %v2711 = vsub.s32 7, %v2710
        %v2712 = vrot.slane %v2679, %v2711
        %v2721 = vadd.f32 %v2671, %v2684
        %v2722 = vadd.f32 %v2672, %v2688
        %v2723 = vadd.f32 %v2673, %v2692
        %v2724 = vadd.f32 %v2674, %v2696
        %v2725 = vadd.f32 %v2675, %v2700
        %v2726 = vadd.f32 %v2676, %v2704
        %v2727 = vadd.f32 %v2677, %v2708
        %v2728 = vadd.f32 %v2678, %v2712
        %vm2729 = vcmp.ge.f32.partialorder %v2721, 0.0
        %vm2730 = vcmp.ge.f32.partialorder %v2722, 0.0
        %vm2731 = vcmp.ge.f32.partialorder %v2723, 0.0
        %vm2732 = vcmp.ge.f32.partialorder %v2724, 0.0
        %vm2733 = vcmp.ge.f32.partialorder %v2725, 0.0
        %vm2734 = vcmp.ge.f32.partialorder %v2726, 0.0
        %vm2735 = vcmp.ge.f32.partialorder %v2727, 0.0
        %vm2736 = vcmp.ge.f32.partialorder %v2728, 0.0
        %v2737 = vsel %vm2729, 1.0, -1.0
        %v2738 = vsel %vm2730, 1.0, -1.0
        %v2739 = vsel %vm2731, 1.0, -1.0
        %v2740 = vsel %vm2732, 1.0, -1.0
        %v2741 = vsel %vm2733, 1.0, -1.0
        %v2742 = vsel %vm2734, 1.0, -1.0
        %v2743 = vsel %vm2735, 1.0, -1.0
        %v2744 = vsel %vm2736, 1.0, -1.0
        %v2745 = vpack.c.bf16 %v2737, %v2737
        %v2746 = vpack.c.bf16 %v2738, %v2738
        %v2747 = vpack.c.bf16 %v2739, %v2739
        %v2748 = vpack.c.bf16 %v2740, %v2740
        %v2749 = vpack.c.bf16 %v2741, %v2741
        %v2750 = vpack.c.bf16 %v2742, %v2742
        %v2751 = vpack.c.bf16 %v2743, %v2743
        %v2752 = vpack.c.bf16 %v2744, %v2744
        %v2761 = vunpack.c.l.b16 %v2745
        %v2762 = vunpack.c.l.b16 %v2746
        %v2763 = vunpack.c.l.b16 %v2747
        %v2764 = vunpack.c.l.b16 %v2748
        %v2765 = vunpack.c.l.b16 %v2749
        %v2766 = vunpack.c.l.b16 %v2750
        %v2767 = vunpack.c.l.b16 %v2751
        %v2768 = vunpack.c.l.b16 %v2752
        %v2769 = vpack.c.b16 %v2762, %v2761
        %v2770 = vpack.c.b16 %v2764, %v2763
        %v2771 = vpack.c.b16 %v2766, %v2765
        %v2772 = vpack.c.b16 %v2768, %v2767
        %2777 = vst [vmem:[%s301] sm:$0xff] %v2769
        %2778 = vst [vmem:[%s301 + $0x8] sm:$0xff] %v2770
        %2779 = vst [vmem:[%s301 + $0x10] sm:$0xff] %v2771
        %2780 = vst [vmem:[%s301 + $0x18] sm:$0xff] %v2772
        %s2781 = sand.u32 %s132, 1
        %s2782 = scalar_lea.sflag [#allocation4], %s2781
        %s2783 = sand.u32 %s132, 1
        %s2784 = smul.addr %s2783, 32
        %s2785 = scalar_lea.vmem [#allocation10], %s2784
        // Predicated region
        $region53: #{tpu_custom_call.1} parent=35 // pred_check
          %p2786 = pneg %p142
        $region54: #{tpu_custom_call.1} parent=35 // pred_check_branch
          %2788 = sbr.rel (%p2786) target = $region56
        $region55: #{tpu_custom_call.1} parent=35 // pred_region
          %s2789 = smul.u32 8, %s25
          %s2791 = ssub.s32 512, 512
          %2792 = vsyncadd %s2782, %s2791
          %s2793 = smul.addr %s2789, 64
          %s2794 = scalar_lea.hbm %s4, %s2793
          %s2796 = sshll.u32 %s2785, 4
          %s2797 = int_to_ptr.vmem [resolvable:$true] %s2796
          %2799 = dma.vmem_to_hbm [thread:$0]  %s2797, 512, %s2794, %s2782
        $region56: #{tpu_custom_call.1} parent=35 // pred_fallthru
          _
      $region36: #{tpu_custom_call.1} parent=5 // pred_fallthru
        _
      %p2800 = scmp.le.s32.totalorder 2, %s20
      // Predicated region
      $region57: #{tpu_custom_call.1} parent=5 // pred_check
        %p2801 = pneg %p2800
      $region58: #{tpu_custom_call.1} parent=5 // pred_check_branch
        %2803 = sbr.rel (%p2801) target = $region60
      $region59: #{tpu_custom_call.1} parent=5 // pred_region
        %s2804 = ssub.s32 %s20, 2
        // Predicated region
        $region61: #{tpu_custom_call.1} parent=59 // pred_check
          %p2805 = pneg %p148
        $region62: #{tpu_custom_call.1} parent=59 // pred_check_branch
          %2807 = sbr.rel (%p2805) target = $region64
        $region63: #{tpu_custom_call.1} parent=59 // pred_region
          %s2808 = sand.u32 %s133, 1
          %s2809 = scalar_lea.sflag [#allocation4], %s2808
          %s2810 = sand.u32 %s133, 1
          %s2811 = smul.addr %s2810, 32
          %s2812 = scalar_lea.vmem [#allocation10], %s2811
          %2813 = dma.done %s2809, 512
        $region64: #{tpu_custom_call.1} parent=59 // pred_fallthru
          _
      $region60: #{tpu_custom_call.1} parent=5 // pred_fallthru
        _
    $region6: #{tpu_custom_call.1} parent=1 // loop_footer
      %s24 = sadd.s32 1, %s20
    $region7: #{tpu_custom_call.1} parent=1 // loop_footer_branch
      %19 = sbr.rel target = $region3
    $region8: #{tpu_custom_call.1} parent=1 // loop_exit
      _
    %2814 = vsyncpa [#allocation3], 1
    %s2815 = scalar_lea.sflag [#allocation3], 1
    %2816 = vsyncpa %s2815, 1
    %2817 = vsyncpa [#allocation6], 1
    %s2818 = scalar_lea.sflag [#allocation6], 1
    %2819 = vsyncpa %s2818, 1
    %2820 = vsyncpa [#allocation9], 1
    %s2821 = scalar_lea.sflag [#allocation9], 1
    %2822 = vsyncpa %s2821, 1
    %2823 = vsyncpa [#allocation4], 1
    %s2824 = scalar_lea.sflag [#allocation4], 1
    %2825 = vsyncpa %s2824, 1

</llo_original>
